<compile_context>
chip_gen: v7x
topology: tpu7x:2x2x1
jax: 0.10.0
libtpu: 0.0.40
codegen_flags: <defaults>
</compile_context>

<pallas_src>
import math
import functools

import jax
import jax.numpy as jnp
from jax.experimental import pallas as pl
from jax.experimental.pallas import tpu as pltpu


def _split_heads(x, h, d_k):
    """(rows, h*d_k) -> (h, rows, d_k) head-major batch (one-time relayout)."""
    return jnp.stack([x[:, i * d_k:(i + 1) * d_k] for i in range(h)], axis=0)


def mha_kernel(q_ref, k_ref, v_ref,
               wq_ref, bq_ref, wk_ref, bk_ref, wv_ref, bv_ref,
               wo_ref, bo_ref,
               out_ref, *, h, d_k):
    """One grid step == (batch b, query tile qi).

    q block:   (1, TQ, D)  bf16
    k/v block: (1, S,  D)  bf16
    wq/wk/wv:  (D, D)      bf16   (packed, x @ W orientation)
    bq/bk/bv:  (1, D)      f32
    wo:        (h, d_k, D) bf16   (final projection split per head)
    bo:        (1, D)      f32
    out block: (1, TQ, D)  f32
    """
    tq = q_ref.shape[1]
    D = h * d_k

    q = q_ref[0]                     # (TQ, D) bf16
    k = k_ref[0]                     # (S,  D) bf16
    v = v_ref[0]                     # (S,  D) bf16

    # Fused all-head input projections: lane-dense (contraction D, output D)
    # bf16 MXU matmuls with f32 accumulation; bias added in f32.
    Q = jnp.dot(q, wq_ref[...], preferred_element_type=jnp.float32) + bq_ref[...]
    K = jnp.dot(k, wk_ref[...], preferred_element_type=jnp.float32) + bk_ref[...]
    V = jnp.dot(v, wv_ref[...], preferred_element_type=jnp.float32) + bv_ref[...]

    # Fold 1/sqrt(d_k) into Q once (cheaper than scaling each (TQ, S) score tile).
    Q = Q * (1.0 / math.sqrt(d_k))

    # Head-major batches: one relayout, after which every attention matmul is
    # batched over the head axis in a single MXU sequence.
    Qh = _split_heads(Q.astype(jnp.bfloat16), h, d_k)   # (h, TQ, d_k)
    Kh = _split_heads(K.astype(jnp.bfloat16), h, d_k)   # (h, S,  d_k)
    Vh = _split_heads(V.astype(jnp.bfloat16), h, d_k)   # (h, S,  d_k)

    # Scores for all heads at once; K contracted on its last dim (no transpose).
    scores = jnp.einsum("hqd,hkd->hqk", Qh, Kh,
                        preferred_element_type=jnp.float32)      # (h, TQ, S) f32

    # Softmax kept in f32 (v5e has no bf16 VPU/EUP); approx reciprocal -> EUP slot.
    scores = scores - jnp.max(scores, axis=-1, keepdims=True)
    p = jnp.exp(scores)
    p = p * pl.reciprocal(jnp.sum(p, axis=-1, keepdims=True), approx=True)
    # TODO(synk): optional coefficient mask (masked_fill -1e9) not wired in.

    # Weighted values, batched over heads: (h, TQ, d_k) f32.
    attn = jnp.einsum("hqk,hkd->hqd", p.astype(jnp.bfloat16), Vh,
                      preferred_element_type=jnp.float32)
    attn = attn.astype(jnp.bfloat16)

    # Final projection: concat(head_h) @ Wo == sum_h head_h @ Wo[h*d_k:(h+1)*d_k],
    # so accumulate each head into a lane-dense (TQ, D) f32 tile (no concat).
    acc = jnp.zeros((tq, D), jnp.float32)
    for hi in range(h):                                  # static unroll, h is small
        acc = acc + jnp.dot(attn[hi], wo_ref[hi],
                            preferred_element_type=jnp.float32)

    out_ref[0] = acc + bo_ref[...]
    # TODO(synk): for long S on v7x (64 MiB VMEM), add a kv grid axis with an
    # online (flash-style) softmax so VMEM use is independent of S.


def multi_headed_attention(q, k, v, params, *, h, block_q=128):
    """q, k, v: (B, S, d_model) float32. Returns (B, S, d_model) float32."""
    B, S, D = q.shape
    assert D % h == 0
    d_k = D // h
    wq, bq, wk, bk, wv, bv, wo, bo = params

    # Query-tile size: multiple of 8 that divides S (falls back to full S).
    tq = block_q if (S % block_q == 0 and block_q % 8 == 0) else S

    bf16 = jnp.bfloat16
    # bf16 MXU operands (halves weight DMA + VMEM); biases / accumulation stay f32.
    qb, kb, vb = q.astype(bf16), k.astype(bf16), v.astype(bf16)
    wq_b, wk_b, wv_b = wq.astype(bf16), wk.astype(bf16), wv.astype(bf16)
    wo_h = wo.astype(bf16).reshape(h, d_k, D)     # per-head slices of Wo

    q_spec = pl.BlockSpec((1, tq, D), lambda b, i: (b, i, 0))
    kv_spec = pl.BlockSpec((1, S, D), lambda b, i: (b, 0, 0))
    w_spec = pl.BlockSpec((D, D), lambda b, i: (0, 0))
    b_spec = pl.BlockSpec((1, D), lambda b, i: (0, 0))
    wo_spec = pl.BlockSpec((h, d_k, D), lambda b, i: (0, 0, 0))
    out_spec = pl.BlockSpec((1, tq, D), lambda b, i: (b, i, 0))

    kernel = functools.partial(mha_kernel, h=h, d_k=d_k)

    return pl.pallas_call(
        kernel,
        out_shape=jax.ShapeDtypeStruct((B, S, D), jnp.float32),
        grid_spec=pltpu.PrefetchScalarGridSpec(
            num_scalar_prefetch=0,
            grid=(B, S // tq),
            in_specs=[q_spec, kv_spec, kv_spec,
                      w_spec, b_spec, w_spec, b_spec, w_spec, b_spec,
                      wo_spec, b_spec],
            out_specs=out_spec,
        ),
        compiler_params=pltpu.CompilerParams(
            dimension_semantics=("parallel", "parallel"),
            # Explicit scoped-VMEM budget: safe on v5e/v6e (128 MiB) and v7x (64 MiB).
            vmem_limit_bytes=32 * 1024 * 1024,
        ),
    )(qb, kb, vb, wq_b, bq, wk_b, bk, wv_b, bv, wo_h, bo)


def init_params(key, d_model, h):
    """Deterministic synthetic parameters (packed 'x @ W' orientation, f32)."""
    ks = jax.random.split(key, 8)
    scale = 1.0 / math.sqrt(d_model)
    wq = jax.random.normal(ks[0], (d_model, d_model), jnp.float32) * scale
    wk = jax.random.normal(ks[1], (d_model, d_model), jnp.float32) * scale
    wv = jax.random.normal(ks[2], (d_model, d_model), jnp.float32) * scale
    wo = jax.random.normal(ks[3], (d_model, d_model), jnp.float32) * scale
    bq = jax.random.normal(ks[4], (1, d_model), jnp.float32) * scale
    bk = jax.random.normal(ks[5], (1, d_model), jnp.float32) * scale
    bv = jax.random.normal(ks[6], (1, d_model), jnp.float32) * scale
    bo = jax.random.normal(ks[7], (1, d_model), jnp.float32) * scale
    return (wq, bq, wk, bk, wv, bv, wo, bo)


def reference_mha(q, k, v, params, *, h):
    """Pure-JAX reference mirroring the PyTorch forward (mask=None, eval dropout),
    with the same bf16 operand rounding / f32 accumulation as the kernel."""
    wq, bq, wk, bk, wv, bv, wo, bo = params
    bf16, f32 = jnp.bfloat16, jnp.float32
    D = q.shape[-1]
    d_k = D // h
    Q = jnp.dot(q.astype(bf16), wq.astype(bf16), preferred_element_type=f32) + bq
    K = jnp.dot(k.astype(bf16), wk.astype(bf16), preferred_element_type=f32) + bk
    V = jnp.dot(v.astype(bf16), wv.astype(bf16), preferred_element_type=f32) + bv
    heads = []
    for hi in range(h):
        sl = slice(hi * d_k, (hi + 1) * d_k)
        s = jnp.einsum("bqd,bkd->bqk",
                       Q[..., sl].astype(bf16), K[..., sl].astype(bf16),
                       preferred_element_type=f32) / math.sqrt(d_k)
        p = jax.nn.softmax(s, axis=-1)
        heads.append(jnp.einsum("bqk,bkd->bqd",
                                p.astype(bf16), V[..., sl].astype(bf16),
                                preferred_element_type=f32))
    multi = jnp.concatenate(heads, axis=-1)
    return jnp.dot(multi.astype(bf16), wo.astype(bf16),
                   preferred_element_type=f32) + bo


if __name__ == "__main__":
    B, S, d_model, h = 2, 8, 32, 4

    key = jax.random.PRNGKey(0)
    kq, kk, kv, kp = jax.random.split(key, 4)
    q = jax.random.normal(kq, (B, S, d_model), jnp.float32)
    k = jax.random.normal(kk, (B, S, d_model), jnp.float32)
    v = jax.random.normal(kv, (B, S, d_model), jnp.float32)
    params = init_params(kp, d_model, h)

    out = multi_headed_attention(q, k, v, params, h=h)
    out = jax.block_until_ready(out)

    ref = reference_mha(q, k, v, params, h=h)
    assert out.shape == (B, S, d_model)
    # Tolerance covers bf16 operand rounding order + approx (EUP) reciprocal.
    assert jnp.allclose(out, ref, atol=5e-2, rtol=5e-2), "mismatch vs pure-JAX reference"

    print("KERNEL_OK")
</pallas_src>

<mosaic_0001>
module attributes {stable_mosaic.version = 11 : i64} {
  func.func @mha_kernel(%arg0: i32, %arg1: i32, %arg2: memref<1x8x32xbf16, #tpu.memory_space<vmem>>, %arg3: memref<1x8x32xbf16, #tpu.memory_space<vmem>>, %arg4: memref<1x8x32xbf16, #tpu.memory_space<vmem>>, %arg5: memref<32x32xbf16, #tpu.memory_space<vmem>>, %arg6: memref<1x32xf32, #tpu.memory_space<vmem>>, %arg7: memref<32x32xbf16, #tpu.memory_space<vmem>>, %arg8: memref<1x32xf32, #tpu.memory_space<vmem>>, %arg9: memref<32x32xbf16, #tpu.memory_space<vmem>>, %arg10: memref<1x32xf32, #tpu.memory_space<vmem>>, %arg11: memref<4x8x32xbf16, #tpu.memory_space<vmem>>, %arg12: memref<1x32xf32, #tpu.memory_space<vmem>>, %arg13: memref<1x8x32xf32, #tpu.memory_space<vmem>>) attributes {dimension_semantics = [#tpu.dimension_semantics<parallel>, #tpu.dimension_semantics<parallel>], iteration_bounds = array<i64: 2, 1>, scalar_prefetch = 0 : i64, scratch_operands = 0 : i64, tpu.core_type = #tpu.core_type<tc>, window_params = [{transform_indices = @transform_0, window_bounds = array<i64: 1, 8, 32>}, {transform_indices = @transform_1, window_bounds = array<i64: 1, 8, 32>}, {transform_indices = @transform_2, window_bounds = array<i64: 1, 8, 32>}, {pipeline_mode = #tpu.pipeline_mode<synchronous>, transform_indices = @transform_3, window_bounds = array<i64: 32, 32>}, {pipeline_mode = #tpu.pipeline_mode<synchronous>, transform_indices = @transform_4, window_bounds = array<i64: 1, 32>}, {pipeline_mode = #tpu.pipeline_mode<synchronous>, transform_indices = @transform_5, window_bounds = array<i64: 32, 32>}, {pipeline_mode = #tpu.pipeline_mode<synchronous>, transform_indices = @transform_6, window_bounds = array<i64: 1, 32>}, {pipeline_mode = #tpu.pipeline_mode<synchronous>, transform_indices = @transform_7, window_bounds = array<i64: 32, 32>}, {pipeline_mode = #tpu.pipeline_mode<synchronous>, transform_indices = @transform_8, window_bounds = array<i64: 1, 32>}, {pipeline_mode = #tpu.pipeline_mode<synchronous>, transform_indices = @transform_9, window_bounds = array<i64: 4, 8, 32>}, {pipeline_mode = #tpu.pipeline_mode<synchronous>, transform_indices = @transform_10, window_bounds = array<i64: 1, 32>}, {transform_indices = @transform_11, window_bounds = array<i64: 1, 8, 32>}]} {
    %c0 = arith.constant 0 : index
    %c0_0 = arith.constant 0 : index
    %c0_1 = arith.constant 0 : index
    %0 = vector.load %arg2[%c0, %c0_0, %c0_1] : memref<1x8x32xbf16, #tpu.memory_space<vmem>>, vector<1x8x32xbf16>
    %1 = vector.shape_cast %0 : vector<1x8x32xbf16> to vector<8x32xbf16>
    %c0_2 = arith.constant 0 : index
    %c0_3 = arith.constant 0 : index
    %c0_4 = arith.constant 0 : index
    %2 = vector.load %arg3[%c0_2, %c0_3, %c0_4] : memref<1x8x32xbf16, #tpu.memory_space<vmem>>, vector<1x8x32xbf16>
    %3 = vector.shape_cast %2 : vector<1x8x32xbf16> to vector<8x32xbf16>
    %c0_5 = arith.constant 0 : index
    %c0_6 = arith.constant 0 : index
    %c0_7 = arith.constant 0 : index
    %4 = vector.load %arg4[%c0_5, %c0_6, %c0_7] : memref<1x8x32xbf16, #tpu.memory_space<vmem>>, vector<1x8x32xbf16>
    %5 = vector.shape_cast %4 : vector<1x8x32xbf16> to vector<8x32xbf16>
    %c0_8 = arith.constant 0 : index
    %c0_9 = arith.constant 0 : index
    %6 = vector.load %arg5[%c0_8, %c0_9] : memref<32x32xbf16, #tpu.memory_space<vmem>>, vector<32x32xbf16>
    %cst = arith.constant dense<0.000000e+00> : vector<8x32xf32>
    %7 = tpu.matmul %1, %6, %cst {dimension_numbers = #tpu.dot_dimension_numbers<[1], [0], [0], [1], [0, 0, 1, 1], [], []>} : vector<8x32xbf16>, vector<32x32xbf16>, vector<8x32xf32> -> vector<8x32xf32>
    %c0_10 = arith.constant 0 : index
    %c0_11 = arith.constant 0 : index
    %8 = vector.load %arg6[%c0_10, %c0_11] : memref<1x32xf32, #tpu.memory_space<vmem>>, vector<1x32xf32>
    %9 = vector.broadcast %8 : vector<1x32xf32> to vector<8x32xf32>
    %10 = arith.addf %7, %9 : vector<8x32xf32>
    %c0_12 = arith.constant 0 : index
    %c0_13 = arith.constant 0 : index
    %11 = vector.load %arg7[%c0_12, %c0_13] : memref<32x32xbf16, #tpu.memory_space<vmem>>, vector<32x32xbf16>
    %cst_14 = arith.constant dense<0.000000e+00> : vector<8x32xf32>
    %12 = tpu.matmul %3, %11, %cst_14 {dimension_numbers = #tpu.dot_dimension_numbers<[1], [0], [0], [1], [0, 0, 1, 1], [], []>} : vector<8x32xbf16>, vector<32x32xbf16>, vector<8x32xf32> -> vector<8x32xf32>
    %c0_15 = arith.constant 0 : index
    %c0_16 = arith.constant 0 : index
    %13 = vector.load %arg8[%c0_15, %c0_16] : memref<1x32xf32, #tpu.memory_space<vmem>>, vector<1x32xf32>
    %14 = vector.broadcast %13 : vector<1x32xf32> to vector<8x32xf32>
    %15 = arith.addf %12, %14 : vector<8x32xf32>
    %c0_17 = arith.constant 0 : index
    %c0_18 = arith.constant 0 : index
    %16 = vector.load %arg9[%c0_17, %c0_18] : memref<32x32xbf16, #tpu.memory_space<vmem>>, vector<32x32xbf16>
    %cst_19 = arith.constant dense<0.000000e+00> : vector<8x32xf32>
    %17 = tpu.matmul %5, %16, %cst_19 {dimension_numbers = #tpu.dot_dimension_numbers<[1], [0], [0], [1], [0, 0, 1, 1], [], []>} : vector<8x32xbf16>, vector<32x32xbf16>, vector<8x32xf32> -> vector<8x32xf32>
    %c0_20 = arith.constant 0 : index
    %c0_21 = arith.constant 0 : index
    %18 = vector.load %arg10[%c0_20, %c0_21] : memref<1x32xf32, #tpu.memory_space<vmem>>, vector<1x32xf32>
    %19 = vector.broadcast %18 : vector<1x32xf32> to vector<8x32xf32>
    %20 = arith.addf %17, %19 : vector<8x32xf32>
    %cst_22 = arith.constant 0.353553385 : f32
    %21 = vector.broadcast %cst_22 : f32 to vector<8x32xf32>
    %22 = arith.mulf %10, %21 : vector<8x32xf32>
    %23 = arith.truncf %22 : vector<8x32xf32> to vector<8x32xbf16>
    %24 = vector.extract_strided_slice %23 {offsets = [0, 0], sizes = [8, 8], strides = [1, 1]} : vector<8x32xbf16> to vector<8x8xbf16>
    %25 = vector.extract_strided_slice %23 {offsets = [0, 8], sizes = [8, 8], strides = [1, 1]} : vector<8x32xbf16> to vector<8x8xbf16>
    %26 = vector.extract_strided_slice %23 {offsets = [0, 16], sizes = [8, 8], strides = [1, 1]} : vector<8x32xbf16> to vector<8x8xbf16>
    %27 = vector.extract_strided_slice %23 {offsets = [0, 24], sizes = [8, 8], strides = [1, 1]} : vector<8x32xbf16> to vector<8x8xbf16>
    %28 = vector.shape_cast %24 : vector<8x8xbf16> to vector<1x8x8xbf16>
    %29 = vector.shape_cast %25 : vector<8x8xbf16> to vector<1x8x8xbf16>
    %30 = vector.shape_cast %26 : vector<8x8xbf16> to vector<1x8x8xbf16>
    %31 = vector.shape_cast %27 : vector<8x8xbf16> to vector<1x8x8xbf16>
    %32 = tpu.concatenate %28, %29, %30, %31 in 0 : vector<1x8x8xbf16>, vector<1x8x8xbf16>, vector<1x8x8xbf16>, vector<1x8x8xbf16> -> vector<4x8x8xbf16>
    %33 = arith.truncf %15 : vector<8x32xf32> to vector<8x32xbf16>
    %34 = vector.extract_strided_slice %33 {offsets = [0, 0], sizes = [8, 8], strides = [1, 1]} : vector<8x32xbf16> to vector<8x8xbf16>
    %35 = vector.extract_strided_slice %33 {offsets = [0, 8], sizes = [8, 8], strides = [1, 1]} : vector<8x32xbf16> to vector<8x8xbf16>
    %36 = vector.extract_strided_slice %33 {offsets = [0, 16], sizes = [8, 8], strides = [1, 1]} : vector<8x32xbf16> to vector<8x8xbf16>
    %37 = vector.extract_strided_slice %33 {offsets = [0, 24], sizes = [8, 8], strides = [1, 1]} : vector<8x32xbf16> to vector<8x8xbf16>
    %38 = vector.shape_cast %34 : vector<8x8xbf16> to vector<1x8x8xbf16>
    %39 = vector.shape_cast %35 : vector<8x8xbf16> to vector<1x8x8xbf16>
    %40 = vector.shape_cast %36 : vector<8x8xbf16> to vector<1x8x8xbf16>
    %41 = vector.shape_cast %37 : vector<8x8xbf16> to vector<1x8x8xbf16>
    %42 = tpu.concatenate %38, %39, %40, %41 in 0 : vector<1x8x8xbf16>, vector<1x8x8xbf16>, vector<1x8x8xbf16>, vector<1x8x8xbf16> -> vector<4x8x8xbf16>
    %43 = arith.truncf %20 : vector<8x32xf32> to vector<8x32xbf16>
    %44 = vector.extract_strided_slice %43 {offsets = [0, 0], sizes = [8, 8], strides = [1, 1]} : vector<8x32xbf16> to vector<8x8xbf16>
    %45 = vector.extract_strided_slice %43 {offsets = [0, 8], sizes = [8, 8], strides = [1, 1]} : vector<8x32xbf16> to vector<8x8xbf16>
    %46 = vector.extract_strided_slice %43 {offsets = [0, 16], sizes = [8, 8], strides = [1, 1]} : vector<8x32xbf16> to vector<8x8xbf16>
    %47 = vector.extract_strided_slice %43 {offsets = [0, 24], sizes = [8, 8], strides = [1, 1]} : vector<8x32xbf16> to vector<8x8xbf16>
    %48 = vector.shape_cast %44 : vector<8x8xbf16> to vector<1x8x8xbf16>
    %49 = vector.shape_cast %45 : vector<8x8xbf16> to vector<1x8x8xbf16>
    %50 = vector.shape_cast %46 : vector<8x8xbf16> to vector<1x8x8xbf16>
    %51 = vector.shape_cast %47 : vector<8x8xbf16> to vector<1x8x8xbf16>
    %52 = tpu.concatenate %48, %49, %50, %51 in 0 : vector<1x8x8xbf16>, vector<1x8x8xbf16>, vector<1x8x8xbf16>, vector<1x8x8xbf16> -> vector<4x8x8xbf16>
    "tpu.trace_start"() <{level = 10 : i32, message = "hqd,hkd->hqk"}> : () -> ()
    %cst_23 = arith.constant dense<0.000000e+00> : vector<4x8x8xf32>
    %53 = tpu.matmul %32, %42, %cst_23 {dimension_numbers = #tpu.dot_dimension_numbers<[2], [2], [1], [1], [0, 0, 0, 1, 1, 1], [0], [0]>} : vector<4x8x8xbf16>, vector<4x8x8xbf16>, vector<4x8x8xf32> -> vector<4x8x8xf32>
    "tpu.trace_stop"() : () -> ()
    %cst_24 = arith.constant dense<0xFF800000> : vector<4x8xf32>
    %54 = vector.multi_reduction <maximumf>, %53, %cst_24 [2] : vector<4x8x8xf32> to vector<4x8xf32>
    %55 = vector.shape_cast %54 : vector<4x8xf32> to vector<4x8x1xf32>
    %56 = vector.broadcast %55 : vector<4x8x1xf32> to vector<4x8x8xf32>
    %57 = arith.subf %53, %56 : vector<4x8x8xf32>
    %58 = math.exp %57 : vector<4x8x8xf32>
    %cst_25 = arith.constant dense<0.000000e+00> : vector<4x8xf32>
    %59 = vector.multi_reduction <add>, %58, %cst_25 [2] : vector<4x8x8xf32> to vector<4x8xf32>
    %60 = vector.shape_cast %59 : vector<4x8xf32> to vector<4x8x1xf32>
    %61 = tpu.reciprocal %60 {approx = true} : vector<4x8x1xf32> -> vector<4x8x1xf32>
    %62 = vector.broadcast %61 : vector<4x8x1xf32> to vector<4x8x8xf32>
    %63 = arith.mulf %58, %62 : vector<4x8x8xf32>
    %64 = arith.truncf %63 : vector<4x8x8xf32> to vector<4x8x8xbf16>
    "tpu.trace_start"() <{level = 10 : i32, message = "hqk,hkd->hqd"}> : () -> ()
    %cst_26 = arith.constant dense<0.000000e+00> : vector<4x8x8xf32>
    %65 = tpu.matmul %64, %52, %cst_26 {dimension_numbers = #tpu.dot_dimension_numbers<[2], [1], [1], [2], [0, 0, 0, 1, 1, 2], [0], [0]>} : vector<4x8x8xbf16>, vector<4x8x8xbf16>, vector<4x8x8xf32> -> vector<4x8x8xf32>
    "tpu.trace_stop"() : () -> ()
    %66 = arith.truncf %65 : vector<4x8x8xf32> to vector<4x8x8xbf16>
    %cst_27 = arith.constant 0.000000e+00 : f32
    %67 = vector.broadcast %cst_27 : f32 to vector<8x32xf32>
    %68 = vector.extract_strided_slice %66 {offsets = [0, 0, 0], sizes = [1, 8, 8], strides = [1, 1, 1]} : vector<4x8x8xbf16> to vector<1x8x8xbf16>
    %69 = vector.shape_cast %68 : vector<1x8x8xbf16> to vector<8x8xbf16>
    %c0_28 = arith.constant 0 : index
    %c0_29 = arith.constant 0 : index
    %c0_30 = arith.constant 0 : index
    %70 = vector.load %arg11[%c0_28, %c0_29, %c0_30] : memref<4x8x32xbf16, #tpu.memory_space<vmem>>, vector<1x8x32xbf16>
    %71 = vector.shape_cast %70 : vector<1x8x32xbf16> to vector<8x32xbf16>
    %cst_31 = arith.constant dense<0.000000e+00> : vector<8x32xf32>
    %72 = tpu.matmul %69, %71, %cst_31 {dimension_numbers = #tpu.dot_dimension_numbers<[1], [0], [0], [1], [0, 0, 1, 1], [], []>} : vector<8x8xbf16>, vector<8x32xbf16>, vector<8x32xf32> -> vector<8x32xf32>
    %73 = arith.addf %67, %72 : vector<8x32xf32>
    %74 = vector.extract_strided_slice %66 {offsets = [1, 0, 0], sizes = [1, 8, 8], strides = [1, 1, 1]} : vector<4x8x8xbf16> to vector<1x8x8xbf16>
    %75 = vector.shape_cast %74 : vector<1x8x8xbf16> to vector<8x8xbf16>
    %c1 = arith.constant 1 : index
    %c0_32 = arith.constant 0 : index
    %c0_33 = arith.constant 0 : index
    %76 = vector.load %arg11[%c1, %c0_32, %c0_33] : memref<4x8x32xbf16, #tpu.memory_space<vmem>>, vector<1x8x32xbf16>
    %77 = vector.shape_cast %76 : vector<1x8x32xbf16> to vector<8x32xbf16>
    %cst_34 = arith.constant dense<0.000000e+00> : vector<8x32xf32>
    %78 = tpu.matmul %75, %77, %cst_34 {dimension_numbers = #tpu.dot_dimension_numbers<[1], [0], [0], [1], [0, 0, 1, 1], [], []>} : vector<8x8xbf16>, vector<8x32xbf16>, vector<8x32xf32> -> vector<8x32xf32>
    %79 = arith.addf %73, %78 : vector<8x32xf32>
    %80 = vector.extract_strided_slice %66 {offsets = [2, 0, 0], sizes = [1, 8, 8], strides = [1, 1, 1]} : vector<4x8x8xbf16> to vector<1x8x8xbf16>
    %81 = vector.shape_cast %80 : vector<1x8x8xbf16> to vector<8x8xbf16>
    %c2 = arith.constant 2 : index
    %c0_35 = arith.constant 0 : index
    %c0_36 = arith.constant 0 : index
    %82 = vector.load %arg11[%c2, %c0_35, %c0_36] : memref<4x8x32xbf16, #tpu.memory_space<vmem>>, vector<1x8x32xbf16>
    %83 = vector.shape_cast %82 : vector<1x8x32xbf16> to vector<8x32xbf16>
    %cst_37 = arith.constant dense<0.000000e+00> : vector<8x32xf32>
    %84 = tpu.matmul %81, %83, %cst_37 {dimension_numbers = #tpu.dot_dimension_numbers<[1], [0], [0], [1], [0, 0, 1, 1], [], []>} : vector<8x8xbf16>, vector<8x32xbf16>, vector<8x32xf32> -> vector<8x32xf32>
    %85 = arith.addf %79, %84 : vector<8x32xf32>
    %86 = vector.extract_strided_slice %66 {offsets = [3, 0, 0], sizes = [1, 8, 8], strides = [1, 1, 1]} : vector<4x8x8xbf16> to vector<1x8x8xbf16>
    %87 = vector.shape_cast %86 : vector<1x8x8xbf16> to vector<8x8xbf16>
    %c3 = arith.constant 3 : index
    %c0_38 = arith.constant 0 : index
    %c0_39 = arith.constant 0 : index
    %88 = vector.load %arg11[%c3, %c0_38, %c0_39] : memref<4x8x32xbf16, #tpu.memory_space<vmem>>, vector<1x8x32xbf16>
    %89 = vector.shape_cast %88 : vector<1x8x32xbf16> to vector<8x32xbf16>
    %cst_40 = arith.constant dense<0.000000e+00> : vector<8x32xf32>
    %90 = tpu.matmul %87, %89, %cst_40 {dimension_numbers = #tpu.dot_dimension_numbers<[1], [0], [0], [1], [0, 0, 1, 1], [], []>} : vector<8x8xbf16>, vector<8x32xbf16>, vector<8x32xf32> -> vector<8x32xf32>
    %91 = arith.addf %85, %90 : vector<8x32xf32>
    %c0_41 = arith.constant 0 : index
    %c0_42 = arith.constant 0 : index
    %92 = vector.load %arg12[%c0_41, %c0_42] : memref<1x32xf32, #tpu.memory_space<vmem>>, vector<1x32xf32>
    %93 = vector.broadcast %92 : vector<1x32xf32> to vector<8x32xf32>
    %94 = arith.addf %91, %93 : vector<8x32xf32>
    %c0_43 = arith.constant 0 : index
    %c0_44 = arith.constant 0 : index
    %c0_45 = arith.constant 0 : index
    %95 = vector.load %arg13[%c0_43, %c0_44, %c0_45] : memref<1x8x32xf32, #tpu.memory_space<vmem>>, vector<1x8x32xf32>
    %96 = vector.shape_cast %95 : vector<1x8x32xf32> to vector<8x32xf32>
    %97 = vector.shape_cast %94 : vector<8x32xf32> to vector<1x8x32xf32>
    tpu.vector_store %arg13[%c0_43, %c0_44, %c0_45], %97 {strides = array<i32>} : memref<1x8x32xf32, #tpu.memory_space<vmem>>, vector<1x8x32xf32>,
    return
  }
  func.func @transform_0(%arg0: i32, %arg1: i32) -> (i32, i32, i32) {
    %c0_i32 = arith.constant 0 : i32
    %c0_i32_0 = arith.constant 0 : i32
    return %arg0, %arg1, %c0_i32 : i32, i32, i32
  }
  func.func @transform_1(%arg0: i32, %arg1: i32) -> (i32, i32, i32) {
    %c0_i32 = arith.constant 0 : i32
    %c0_i32_0 = arith.constant 0 : i32
    %c0_i32_1 = arith.constant 0 : i32
    return %arg0, %c0_i32, %c0_i32_0 : i32, i32, i32
  }
  func.func @transform_2(%arg0: i32, %arg1: i32) -> (i32, i32, i32) {
    %c0_i32 = arith.constant 0 : i32
    %c0_i32_0 = arith.constant 0 : i32
    %c0_i32_1 = arith.constant 0 : i32
    return %arg0, %c0_i32, %c0_i32_0 : i32, i32, i32
  }
  func.func @transform_3(%arg0: i32, %arg1: i32) -> (i32, i32) {
    %c0_i32 = arith.constant 0 : i32
    %c0_i32_0 = arith.constant 0 : i32
    %c0_i32_1 = arith.constant 0 : i32
    return %c0_i32, %c0_i32_0 : i32, i32
  }
  func.func @transform_4(%arg0: i32, %arg1: i32) -> (i32, i32) {
    %c0_i32 = arith.constant 0 : i32
    %c0_i32_0 = arith.constant 0 : i32
    %c0_i32_1 = arith.constant 0 : i32
    return %c0_i32, %c0_i32_0 : i32, i32
  }
  func.func @transform_5(%arg0: i32, %arg1: i32) -> (i32, i32) {
    %c0_i32 = arith.constant 0 : i32
    %c0_i32_0 = arith.constant 0 : i32
    %c0_i32_1 = arith.constant 0 : i32
    return %c0_i32, %c0_i32_0 : i32, i32
  }
  func.func @transform_6(%arg0: i32, %arg1: i32) -> (i32, i32) {
    %c0_i32 = arith.constant 0 : i32
    %c0_i32_0 = arith.constant 0 : i32
    %c0_i32_1 = arith.constant 0 : i32
    return %c0_i32, %c0_i32_0 : i32, i32
  }
  func.func @transform_7(%arg0: i32, %arg1: i32) -> (i32, i32) {
    %c0_i32 = arith.constant 0 : i32
    %c0_i32_0 = arith.constant 0 : i32
    %c0_i32_1 = arith.constant 0 : i32
    return %c0_i32, %c0_i32_0 : i32, i32
  }
  func.func @transform_8(%arg0: i32, %arg1: i32) -> (i32, i32) {
    %c0_i32 = arith.constant 0 : i32
    %c0_i32_0 = arith.constant 0 : i32
    %c0_i32_1 = arith.constant 0 : i32
    return %c0_i32, %c0_i32_0 : i32, i32
  }
  func.func @transform_9(%arg0: i32, %arg1: i32) -> (i32, i32, i32) {
    %c0_i32 = arith.constant 0 : i32
    %c0_i32_0 = arith.constant 0 : i32
    %c0_i32_1 = arith.constant 0 : i32
    %c0_i32_2 = arith.constant 0 : i32
    return %c0_i32, %c0_i32_0, %c0_i32_1 : i32, i32, i32
  }
  func.func @transform_10(%arg0: i32, %arg1: i32) -> (i32, i32) {
    %c0_i32 = arith.constant 0 : i32
    %c0_i32_0 = arith.constant 0 : i32
    %c0_i32_1 = arith.constant 0 : i32
    return %c0_i32, %c0_i32_0 : i32, i32
  }
  func.func @transform_11(%arg0: i32, %arg1: i32) -> (i32, i32, i32) {
    %c0_i32 = arith.constant 0 : i32
    %c0_i32_0 = arith.constant 0 : i32
    return %arg0, %arg1, %c0_i32 : i32, i32, i32
  }
}

</mosaic_0001>

<llo_original>
// kernel: tpu_custom_call.1
$region0: #{tpu_custom_call.1}
  #allocation0 [shape = 'u32[]', space=smem, size = 0x4, offset = 0x4, fixed_abs, tag = 'smem constant byte address 0x4 - core index']
  #allocation1 [shape = 'u32[144,128]{1,0:T(1,128)}', space=vmem, size = 0x12000, scoped, tag = 'internal scratch']
  %s0 = inlined_call_operand.hbm [shape: bf16[2,8,32], index: 0, kind: input, shape index: {}]
  %s1 = inlined_call_operand.hbm [shape: bf16[2,8,32], index: 1, kind: input, shape index: {}]
  %s2 = inlined_call_operand.hbm [shape: bf16[2,8,32], index: 2, kind: input, shape index: {}]
  %s3 = inlined_call_operand.hbm [shape: bf16[32,32], index: 3, kind: input, shape index: {}]
  %s4 = inlined_call_operand.vmem [shape: f32[1,32], index: 4, kind: input, shape index: {}]
  %s5 = inlined_call_operand.vmem [shape: bf16[32,32], index: 5, kind: input, shape index: {}]
  %s6 = inlined_call_operand.vmem [shape: f32[1,32], index: 6, kind: input, shape index: {}]
  %s7 = inlined_call_operand.hbm [shape: bf16[32,32], index: 7, kind: input, shape index: {}]
  %s8 = inlined_call_operand.hbm [shape: f32[1,32], index: 8, kind: input, shape index: {}]
  %s9 = inlined_call_operand.vmem [shape: bf16[4,8,32], index: 9, kind: input, shape index: {}]
  %s10 = inlined_call_operand.vmem [shape: f32[1,32], index: 10, kind: input, shape index: {}]
  %s11 = inlined_call_operand.hbm [shape: f32[2,8,32], index: 11, kind: output, shape index: {}]
  %s12 = sld [smem:[#allocation0]]
  $region101: #{tpu_custom_call.1} parent=0
    _
  %s14 = ssub.s32 1, %s12
  %s15 = scalar_select 0, %s14, %s12
  $region1: #{tpu_custom_call.1} parent=0
    #allocation2 [shape = 'u8[4096]{0}', space=vmem, size = 0x1000, scoped, tag = 'input window, operand 0']
    #allocation3 [shape = 's32[2]{0}', space=sflag, size = 0x8, scoped, tag = 'scoped memory for tpu_custom_call.1']
    #allocation4 [shape = 's32[2]{0}', space=sflag, size = 0x8, scoped, tag = 'scoped memory for tpu_custom_call.1']
    #allocation5 [shape = 'u8[4096]{0}', space=vmem, size = 0x1000, scoped, tag = 'input window, operand 1']
    #allocation6 [shape = 's32[2]{0}', space=sflag, size = 0x8, scoped, tag = 'scoped memory for tpu_custom_call.1']
    #allocation7 [shape = 'u8[4096]{0}', space=vmem, size = 0x1000, scoped, tag = 'input window, operand 2']
    #allocation8 [shape = 'u8[8192]{0}', space=vmem, size = 0x2000, scoped, tag = 'input window, operand 3, single buffered']
    #allocation9 [shape = 's32[1]{0}', space=sflag, size = 0x4, scoped, tag = 'scoped memory for tpu_custom_call.1']
    #allocation10 [shape = 'u8[8192]{0}', space=vmem, size = 0x2000, scoped, tag = 'input window, operand 7, single buffered']
    #allocation11 [shape = 'u8[512]{0}', space=vmem, size = 0x400, scoped, tag = 'input window, operand 8, single buffered']
    #allocation12 [shape = 's32[1]{0}', space=sflag, size = 0x4, scoped, tag = 'scoped memory for tpu_custom_call.1']
    #allocation13 [shape = 'u8[8192]{0}', space=vmem, size = 0x2000, scoped, tag = 'output window, operand 0']
    %16 = vsyncpa [#allocation3], 0
    %s17 = scalar_lea.sflag [#allocation3], 1
    %18 = vsyncpa %s17, 0
    %19 = vsyncpa [#allocation6], 0
    %s20 = scalar_lea.sflag [#allocation6], 1
    %21 = vsyncpa %s20, 0
    %22 = vsyncpa [#allocation9], 0
    %23 = vsyncpa [#allocation12], 0
    %24 = vsyncpa [#allocation4], 0
    %s25 = scalar_lea.sflag [#allocation4], 1
    %26 = vsyncpa %s25, 0
    loop: start=0, step=1, limit=4
    $region2: #{tpu_custom_call.1} parent=1 // loop_pre_header
      _
    $region3: #{tpu_custom_call.1} parent=1 // loop_header
      %s28 = sphi 0, %s32
      %p29 = scmp.ge.s32.totalorder %s28, 4
      %s35 = sphi 0, %s47
      %s36 = sphi 0, %s43
      %s37 = sphi 0, %s35
      %s38 = sphi 0, %s36
      %s39 = sphi 0, %s37
      %s40 = sphi 0, %s38
      %s52 = sphi 0, %s54
      %s55 = sphi 0, %s52
      %s56 = sphi 0, %s55
      %s72 = sphi 0, %s56
      %s78 = sphi 0, %s80
      %s81 = sphi 0, %s78
      %s82 = sphi 0, %s81
      %s98 = sphi 0, %s82
      %s104 = sphi 0, %s106
      %s107 = sphi 0, %s104
      %s108 = sphi 0, %s107
      %s124 = sphi 0, %s108
      %s128 = sphi 0, %s128
      %s130 = sphi 0, %s128
      %s131 = sphi 0, %s130
      %s145 = sphi 0, %s131
      %s149 = sphi 0, %s149
      %s151 = sphi 0, %s149
      %s152 = sphi 0, %s151
      %s166 = sphi 0, %s152
      %s170 = sphi 0, %s170
      %s172 = sphi 0, %s170
      %s173 = sphi 0, %s172
      %s187 = sphi 0, %s173
      %s191 = sphi 0, %s191
      %s193 = sphi 0, %s191
      %s194 = sphi 0, %s193
      %s208 = sphi 0, %s194
      %s212 = sphi 0, %s212
      %s214 = sphi 0, %s212
      %s215 = sphi 0, %s214
      %s229 = sphi 0, %s215
      %s233 = sphi 0, %s233
      %s235 = sphi 0, %s233
      %s236 = sphi 0, %s235
      %s250 = sphi 0, %s236
      %s254 = sphi 0, %s254
      %s256 = sphi 0, %s254
      %s257 = sphi 0, %s256
      %s271 = sphi 0, %s257
      %s275 = sphi 0, %s275
      %s277 = sphi 0, %s275
      %s278 = sphi 0, %s277
      %s292 = sphi 0, %s278
      %s300 = sphi 0, %s302
      %s303 = sphi 0, %s300
      %s304 = sphi 0, %s303
      %s320 = sphi 0, %s304
    $region4: #{tpu_custom_call.1} parent=1 // loop_header_branch
      %31 = sbr.rel (%p29) target = $region8
    $region5: #{tpu_custom_call.1} parent=1 // loop_body
      %s33 = ssub.s32 %s28, 1
      %s34 = ssub.s32 %s28, 2
      %s41 = sadd.s32 1, %s36
      %p42 = scmp.ge.s32.totalorder %s41, 1
      %s43 = scalar_select %p42, 0, %s41
      %s44 = sadd.s32 1, %s35
      %s45 = scalar_select %p42, %s44, %s35
      %p46 = scmp.ge.s32.totalorder %s45, 2
      %s47 = scalar_select %p46, 0, %s45
      %s48 = ssub.s32 %s35, %s47
      %s49 = ssub.s32 %s36, %s43
      %s50 = sor.u32 %s48, %s49
      %p51 = scmp.eq.s32.totalorder %s50, 0
      %s53 = sadd.s32 %s52, 1
      %s54 = scalar_select %p51, %s52, %s53
      %p57 = pneg %p51
      %p58 = scmp.eq.s32.totalorder %s28, 1
      %p59 = por %p57, %p58
      %p60 = scmp.ne.s32.totalorder %s52, %s55
      %p61 = scmp.eq.s32.totalorder %s28, 0
      %p62 = por %p60, %p61
      %p63 = scmp.ne.s32.totalorder %s52, %s55
      %p64 = scmp.eq.s32.totalorder %s33, 1
      %p65 = por %p63, %p64
      %p66 = scmp.ne.s32.totalorder %s55, %s56
      %p67 = scmp.eq.s32.totalorder %s33, 0
      %p68 = por %p66, %p67
      %p69 = scmp.ne.s32.totalorder %s55, %s56
      %p70 = scmp.eq.s32.totalorder %s34, 1
      %p71 = por %p69, %p70
      %p73 = scmp.ne.s32.totalorder %s56, %s72
      %p74 = scmp.eq.s32.totalorder %s34, 0
      %p75 = por %p73, %p74
      %s76 = ssub.s32 %s35, %s47
      %p77 = scmp.eq.s32.totalorder %s76, 0
      %s79 = sadd.s32 %s78, 1
      %s80 = scalar_select %p77, %s78, %s79
      %p83 = pneg %p77
      %p84 = scmp.eq.s32.totalorder %s28, 1
      %p85 = por %p83, %p84
      %p86 = scmp.ne.s32.totalorder %s78, %s81
      %p87 = scmp.eq.s32.totalorder %s28, 0
      %p88 = por %p86, %p87
      %p89 = scmp.ne.s32.totalorder %s78, %s81
      %p90 = scmp.eq.s32.totalorder %s33, 1
      %p91 = por %p89, %p90
      %p92 = scmp.ne.s32.totalorder %s81, %s82
      %p93 = scmp.eq.s32.totalorder %s33, 0
      %p94 = por %p92, %p93
      %p95 = scmp.ne.s32.totalorder %s81, %s82
      %p96 = scmp.eq.s32.totalorder %s34, 1
      %p97 = por %p95, %p96
      %p99 = scmp.ne.s32.totalorder %s82, %s98
      %p100 = scmp.eq.s32.totalorder %s34, 0
      %p101 = por %p99, %p100
      %s102 = ssub.s32 %s35, %s47
      %p103 = scmp.eq.s32.totalorder %s102, 0
      %s105 = sadd.s32 %s104, 1
      %s106 = scalar_select %p103, %s104, %s105
      %p109 = pneg %p103
      %p110 = scmp.eq.s32.totalorder %s28, 1
      %p111 = por %p109, %p110
      %p112 = scmp.ne.s32.totalorder %s104, %s107
      %p113 = scmp.eq.s32.totalorder %s28, 0
      %p114 = por %p112, %p113
      %p115 = scmp.ne.s32.totalorder %s104, %s107
      %p116 = scmp.eq.s32.totalorder %s33, 1
      %p117 = por %p115, %p116
      %p118 = scmp.ne.s32.totalorder %s107, %s108
      %p119 = scmp.eq.s32.totalorder %s33, 0
      %p120 = por %p118, %p119
      %p121 = scmp.ne.s32.totalorder %s107, %s108
      %p122 = scmp.eq.s32.totalorder %s34, 1
      %p123 = por %p121, %p122
      %p125 = scmp.ne.s32.totalorder %s108, %s124
      %p126 = scmp.eq.s32.totalorder %s34, 0
      %p127 = por %p125, %p126
      %s129 = sadd.s32 %s128, 1
      %p132 = scmp.eq.s32.totalorder %s28, 1
      %p133 = scmp.ne.s32.totalorder %s128, %s130
      %p134 = scmp.eq.s32.totalorder %s28, 0
      %p135 = por %p133, %p134
      %p136 = scmp.ne.s32.totalorder %s128, %s130
      %p137 = scmp.eq.s32.totalorder %s33, 1
      %p138 = por %p136, %p137
      %p139 = scmp.ne.s32.totalorder %s130, %s131
      %p140 = scmp.eq.s32.totalorder %s33, 0
      %p141 = por %p139, %p140
      %p142 = scmp.ne.s32.totalorder %s130, %s131
      %p143 = scmp.eq.s32.totalorder %s34, 1
      %p144 = por %p142, %p143
      %p146 = scmp.ne.s32.totalorder %s131, %s145
      %p147 = scmp.eq.s32.totalorder %s34, 0
      %p148 = por %p146, %p147
      %s150 = sadd.s32 %s149, 1
      %p153 = scmp.eq.s32.totalorder %s28, 1
      %p154 = scmp.ne.s32.totalorder %s149, %s151
      %p155 = scmp.eq.s32.totalorder %s28, 0
      %p156 = por %p154, %p155
      %p157 = scmp.ne.s32.totalorder %s149, %s151
      %p158 = scmp.eq.s32.totalorder %s33, 1
      %p159 = por %p157, %p158
      %p160 = scmp.ne.s32.totalorder %s151, %s152
      %p161 = scmp.eq.s32.totalorder %s33, 0
      %p162 = por %p160, %p161
      %p163 = scmp.ne.s32.totalorder %s151, %s152
      %p164 = scmp.eq.s32.totalorder %s34, 1
      %p165 = por %p163, %p164
      %p167 = scmp.ne.s32.totalorder %s152, %s166
      %p168 = scmp.eq.s32.totalorder %s34, 0
      %p169 = por %p167, %p168
      %s171 = sadd.s32 %s170, 1
      %p174 = scmp.eq.s32.totalorder %s28, 1
      %p175 = scmp.ne.s32.totalorder %s170, %s172
      %p176 = scmp.eq.s32.totalorder %s28, 0
      %p177 = por %p175, %p176
      %p178 = scmp.ne.s32.totalorder %s170, %s172
      %p179 = scmp.eq.s32.totalorder %s33, 1
      %p180 = por %p178, %p179
      %p181 = scmp.ne.s32.totalorder %s172, %s173
      %p182 = scmp.eq.s32.totalorder %s33, 0
      %p183 = por %p181, %p182
      %p184 = scmp.ne.s32.totalorder %s172, %s173
      %p185 = scmp.eq.s32.totalorder %s34, 1
      %p186 = por %p184, %p185
      %p188 = scmp.ne.s32.totalorder %s173, %s187
      %p189 = scmp.eq.s32.totalorder %s34, 0
      %p190 = por %p188, %p189
      %s192 = sadd.s32 %s191, 1
      %p195 = scmp.eq.s32.totalorder %s28, 1
      %p196 = scmp.ne.s32.totalorder %s191, %s193
      %p197 = scmp.eq.s32.totalorder %s28, 0
      %p198 = por %p196, %p197
      %p199 = scmp.ne.s32.totalorder %s191, %s193
      %p200 = scmp.eq.s32.totalorder %s33, 1
      %p201 = por %p199, %p200
      %p202 = scmp.ne.s32.totalorder %s193, %s194
      %p203 = scmp.eq.s32.totalorder %s33, 0
      %p204 = por %p202, %p203
      %p205 = scmp.ne.s32.totalorder %s193, %s194
      %p206 = scmp.eq.s32.totalorder %s34, 1
      %p207 = por %p205, %p206
      %p209 = scmp.ne.s32.totalorder %s194, %s208
      %p210 = scmp.eq.s32.totalorder %s34, 0
      %p211 = por %p209, %p210
      %s213 = sadd.s32 %s212, 1
      %p216 = scmp.eq.s32.totalorder %s28, 1
      %p217 = scmp.ne.s32.totalorder %s212, %s214
      %p218 = scmp.eq.s32.totalorder %s28, 0
      %p219 = por %p217, %p218
      %p220 = scmp.ne.s32.totalorder %s212, %s214
      %p221 = scmp.eq.s32.totalorder %s33, 1
      %p222 = por %p220, %p221
      %p223 = scmp.ne.s32.totalorder %s214, %s215
      %p224 = scmp.eq.s32.totalorder %s33, 0
      %p225 = por %p223, %p224
      %p226 = scmp.ne.s32.totalorder %s214, %s215
      %p227 = scmp.eq.s32.totalorder %s34, 1
      %p228 = por %p226, %p227
      %p230 = scmp.ne.s32.totalorder %s215, %s229
      %p231 = scmp.eq.s32.totalorder %s34, 0
      %p232 = por %p230, %p231
      %s234 = sadd.s32 %s233, 1
      %p237 = scmp.eq.s32.totalorder %s28, 1
      %p238 = scmp.ne.s32.totalorder %s233, %s235
      %p239 = scmp.eq.s32.totalorder %s28, 0
      %p240 = por %p238, %p239
      %p241 = scmp.ne.s32.totalorder %s233, %s235
      %p242 = scmp.eq.s32.totalorder %s33, 1
      %p243 = por %p241, %p242
      %p244 = scmp.ne.s32.totalorder %s235, %s236
      %p245 = scmp.eq.s32.totalorder %s33, 0
      %p246 = por %p244, %p245
      %p247 = scmp.ne.s32.totalorder %s235, %s236
      %p248 = scmp.eq.s32.totalorder %s34, 1
      %p249 = por %p247, %p248
      %p251 = scmp.ne.s32.totalorder %s236, %s250
      %p252 = scmp.eq.s32.totalorder %s34, 0
      %p253 = por %p251, %p252
      %s255 = sadd.s32 %s254, 1
      %p258 = scmp.eq.s32.totalorder %s28, 1
      %p259 = scmp.ne.s32.totalorder %s254, %s256
      %p260 = scmp.eq.s32.totalorder %s28, 0
      %p261 = por %p259, %p260
      %p262 = scmp.ne.s32.totalorder %s254, %s256
      %p263 = scmp.eq.s32.totalorder %s33, 1
      %p264 = por %p262, %p263
      %p265 = scmp.ne.s32.totalorder %s256, %s257
      %p266 = scmp.eq.s32.totalorder %s33, 0
      %p267 = por %p265, %p266
      %p268 = scmp.ne.s32.totalorder %s256, %s257
      %p269 = scmp.eq.s32.totalorder %s34, 1
      %p270 = por %p268, %p269
      %p272 = scmp.ne.s32.totalorder %s257, %s271
      %p273 = scmp.eq.s32.totalorder %s34, 0
      %p274 = por %p272, %p273
      %s276 = sadd.s32 %s275, 1
      %p279 = scmp.eq.s32.totalorder %s28, 1
      %p280 = scmp.ne.s32.totalorder %s275, %s277
      %p281 = scmp.eq.s32.totalorder %s28, 0
      %p282 = por %p280, %p281
      %p283 = scmp.ne.s32.totalorder %s275, %s277
      %p284 = scmp.eq.s32.totalorder %s33, 1
      %p285 = por %p283, %p284
      %p286 = scmp.ne.s32.totalorder %s277, %s278
      %p287 = scmp.eq.s32.totalorder %s33, 0
      %p288 = por %p286, %p287
      %p289 = scmp.ne.s32.totalorder %s277, %s278
      %p290 = scmp.eq.s32.totalorder %s34, 1
      %p291 = por %p289, %p290
      %p293 = scmp.ne.s32.totalorder %s278, %s292
      %p294 = scmp.eq.s32.totalorder %s34, 0
      %p295 = por %p293, %p294
      %s296 = ssub.s32 %s35, %s47
      %s297 = ssub.s32 %s36, %s43
      %s298 = sor.u32 %s296, %s297
      %p299 = scmp.eq.s32.totalorder %s298, 0
      %s301 = sadd.s32 %s300, 1
      %s302 = scalar_select %p299, %s300, %s301
      %p305 = pneg %p299
      %p306 = scmp.eq.s32.totalorder %s28, 1
      %p307 = por %p305, %p306
      %p308 = scmp.ne.s32.totalorder %s300, %s303
      %p309 = scmp.eq.s32.totalorder %s28, 0
      %p310 = por %p308, %p309
      %p311 = scmp.ne.s32.totalorder %s300, %s303
      %p312 = scmp.eq.s32.totalorder %s33, 1
      %p313 = por %p311, %p312
      %p314 = scmp.ne.s32.totalorder %s303, %s304
      %p315 = scmp.eq.s32.totalorder %s33, 0
      %p316 = por %p314, %p315
      %p317 = scmp.ne.s32.totalorder %s303, %s304
      %p318 = scmp.eq.s32.totalorder %s34, 1
      %p319 = por %p317, %p318
      %p321 = scmp.ne.s32.totalorder %s304, %s320
      %p322 = scmp.eq.s32.totalorder %s34, 0
      %p323 = por %p321, %p322
      %p324 = scmp.le.s32.totalorder 1, %s28
      %p325 = scmp.lt.s32.totalorder %s28, 3
      %p326 = pnand %p324, %p325
      %p327 = pneg %p326
      // Predicated region
      $region9: #{tpu_custom_call.1} parent=5 // pred_check
        _
      $region10: #{tpu_custom_call.1} parent=5 // pred_check_branch
        %329 = sbr.rel (%p326) target = $region12
      $region11: #{tpu_custom_call.1} parent=5 // pred_region
        %s330 = ssub.s32 %s28, 1
        // Predicated region
        $region13: #{tpu_custom_call.1} parent=11 // pred_check
          %p331 = pneg %p141
        $region14: #{tpu_custom_call.1} parent=11 // pred_check_branch
          %333 = sbr.rel (%p331) target = $region16
        $region15: #{tpu_custom_call.1} parent=11 // pred_region
          %s335 = ssub.s32 256, 256
          %336 = vsyncadd [#allocation9], %s335
          %s337 = sshll.u32 [#allocation8], 4
          %s338 = int_to_ptr.vmem [resolvable:$true] %s337
          %343 = dma.hbm_to_vmem [thread:$0]  %s3, 256, %s338, [#allocation9], 64, 64, 4
        $region16: #{tpu_custom_call.1} parent=11 // pred_fallthru
          _
        // Predicated region
        $region17: #{tpu_custom_call.1} parent=11 // pred_check
          %p344 = pneg %p162
        $region18: #{tpu_custom_call.1} parent=11 // pred_check_branch
          %346 = sbr.rel (%p344) target = $region20
        $region19: #{tpu_custom_call.1} parent=11 // pred_region
          _
        $region20: #{tpu_custom_call.1} parent=11 // pred_fallthru
          _
        // Predicated region
        $region21: #{tpu_custom_call.1} parent=11 // pred_check
          %p347 = pneg %p183
        $region22: #{tpu_custom_call.1} parent=11 // pred_check_branch
          %349 = sbr.rel (%p347) target = $region24
        $region23: #{tpu_custom_call.1} parent=11 // pred_region
          _
        $region24: #{tpu_custom_call.1} parent=11 // pred_fallthru
          _
        // Predicated region
        $region25: #{tpu_custom_call.1} parent=11 // pred_check
          %p350 = pneg %p204
        $region26: #{tpu_custom_call.1} parent=11 // pred_check_branch
          %352 = sbr.rel (%p350) target = $region28
        $region27: #{tpu_custom_call.1} parent=11 // pred_region
          _
        $region28: #{tpu_custom_call.1} parent=11 // pred_fallthru
          _
        // Predicated region
        $region29: #{tpu_custom_call.1} parent=11 // pred_check
          %p353 = pneg %p225
        $region30: #{tpu_custom_call.1} parent=11 // pred_check_branch
          %355 = sbr.rel (%p353) target = $region32
        $region31: #{tpu_custom_call.1} parent=11 // pred_region
          %s357 = ssub.s32 256, 256
          %358 = vsyncadd [#allocation9], %s357
          %s359 = sshll.u32 [#allocation10], 4
          %s360 = int_to_ptr.vmem [resolvable:$true] %s359
          %365 = dma.hbm_to_vmem [thread:$0]  %s7, 256, %s360, [#allocation9], 64, 64, 4
        $region32: #{tpu_custom_call.1} parent=11 // pred_fallthru
          _
        // Predicated region
        $region33: #{tpu_custom_call.1} parent=11 // pred_check
          %p366 = pneg %p246
        $region34: #{tpu_custom_call.1} parent=11 // pred_check_branch
          %368 = sbr.rel (%p366) target = $region36
        $region35: #{tpu_custom_call.1} parent=11 // pred_region
          %s370 = ssub.s32 16, 16
          %371 = vsyncadd [#allocation12], %s370
          %s373 = sshll.u32 [#allocation11], 4
          %s374 = int_to_ptr.vmem [resolvable:$true] %s373
          %376 = dma.hbm_to_vmem [thread:$0]  %s8, 16, %s374, [#allocation12]
        $region36: #{tpu_custom_call.1} parent=11 // pred_fallthru
          _
        // Predicated region
        $region37: #{tpu_custom_call.1} parent=11 // pred_check
          %p377 = pneg %p267
        $region38: #{tpu_custom_call.1} parent=11 // pred_check_branch
          %379 = sbr.rel (%p377) target = $region40
        $region39: #{tpu_custom_call.1} parent=11 // pred_region
          _
        $region40: #{tpu_custom_call.1} parent=11 // pred_fallthru
          _
        // Predicated region
        $region41: #{tpu_custom_call.1} parent=11 // pred_check
          %p380 = pneg %p288
        $region42: #{tpu_custom_call.1} parent=11 // pred_check_branch
          %382 = sbr.rel (%p380) target = $region44
        $region43: #{tpu_custom_call.1} parent=11 // pred_region
          _
        $region44: #{tpu_custom_call.1} parent=11 // pred_fallthru
          _
      $region12: #{tpu_custom_call.1} parent=5 // pred_fallthru
        _
      %p383 = scmp.lt.s32.totalorder %s28, 2
      // Predicated region
      $region45: #{tpu_custom_call.1} parent=5 // pred_check
        %p384 = pneg %p383
      $region46: #{tpu_custom_call.1} parent=5 // pred_check_branch
        %386 = sbr.rel (%p384) target = $region48
      $region47: #{tpu_custom_call.1} parent=5 // pred_region
        // Predicated region
        $region49: #{tpu_custom_call.1} parent=47 // pred_check
          %p387 = pneg %p62
        $region50: #{tpu_custom_call.1} parent=47 // pred_check_branch
          %389 = sbr.rel (%p387) target = $region52
        $region51: #{tpu_custom_call.1} parent=47 // pred_region
          %s390 = sand.u32 %s52, 1
          %s391 = scalar_lea.sflag [#allocation3], %s390
          %s392 = sand.u32 %s52, 1
          %s393 = smul.addr %s392, 4
          %s394 = scalar_lea.vmem [#allocation2], %s393
          %s396 = ssub.s32 64, 64
          %397 = vsyncadd %s391, %s396
          %s398 = sadd.s32 %s36, %s35
          %s399 = smul.addr %s398, 64
          %s400 = scalar_lea.hbm %s0, %s399
          %s402 = sshll.u32 %s394, 4
          %s403 = int_to_ptr.vmem [resolvable:$true] %s402
          %405 = dma.hbm_to_vmem [thread:$0]  %s400, 64, %s403, %s391
        $region52: #{tpu_custom_call.1} parent=47 // pred_fallthru
          _
        // Predicated region
        $region53: #{tpu_custom_call.1} parent=47 // pred_check
          %p406 = pneg %p88
        $region54: #{tpu_custom_call.1} parent=47 // pred_check_branch
          %408 = sbr.rel (%p406) target = $region56
        $region55: #{tpu_custom_call.1} parent=47 // pred_region
          %s409 = sand.u32 %s28, 1
          %s410 = scalar_lea.sflag [#allocation6], %s409
          %s411 = sand.u32 %s78, 1
          %s412 = smul.addr %s411, 4
          %s413 = scalar_lea.vmem [#allocation5], %s412
          %s415 = ssub.s32 64, 64
          %416 = vsyncadd %s410, %s415
          %s417 = smul.addr %s35, 64
          %s418 = scalar_lea.hbm %s1, %s417
          %s420 = sshll.u32 %s413, 4
          %s421 = int_to_ptr.vmem [resolvable:$true] %s420
          %423 = dma.hbm_to_vmem [thread:$0]  %s418, 64, %s421, %s410
        $region56: #{tpu_custom_call.1} parent=47 // pred_fallthru
          _
        // Predicated region
        $region57: #{tpu_custom_call.1} parent=47 // pred_check
          %p424 = pneg %p114
        $region58: #{tpu_custom_call.1} parent=47 // pred_check_branch
          %426 = sbr.rel (%p424) target = $region60
        $region59: #{tpu_custom_call.1} parent=47 // pred_region
          %s427 = sand.u32 %s28, 1
          %s428 = scalar_lea.sflag [#allocation6], %s427
          %s429 = sand.u32 %s104, 1
          %s430 = smul.addr %s429, 4
          %s431 = scalar_lea.vmem [#allocation7], %s430
          %s433 = ssub.s32 64, 64
          %434 = vsyncadd %s428, %s433
          %s435 = smul.addr %s35, 64
          %s436 = scalar_lea.hbm %s2, %s435
          %s438 = sshll.u32 %s431, 4
          %s439 = int_to_ptr.vmem [resolvable:$true] %s438
          %441 = dma.hbm_to_vmem [thread:$0]  %s436, 64, %s439, %s428
        $region60: #{tpu_custom_call.1} parent=47 // pred_fallthru
          _
      $region48: #{tpu_custom_call.1} parent=5 // pred_fallthru
        _
      %p442 = scmp.le.s32.totalorder 1, %s28
      %p443 = scmp.lt.s32.totalorder %s28, 3
      %p444 = pnand %p442, %p443
      %p445 = pneg %p444
      // Predicated region
      $region61: #{tpu_custom_call.1} parent=5 // pred_check
        _
      $region62: #{tpu_custom_call.1} parent=5 // pred_check_branch
        %447 = sbr.rel (%p444) target = $region64
      $region63: #{tpu_custom_call.1} parent=5 // pred_region
        %s448 = ssub.s32 %s28, 1
        %s449 = sand.u32 %s55, 1
        %s450 = scalar_lea.sflag [#allocation3], %s449
        %s451 = sand.u32 %s55, 1
        %s452 = smul.addr %s451, 4
        %s453 = scalar_lea.vmem [#allocation2], %s452
        // Predicated region
        $region65: #{tpu_custom_call.1} parent=63 // pred_check
          %p454 = pneg %p68
        $region66: #{tpu_custom_call.1} parent=63 // pred_check_branch
          %456 = sbr.rel (%p454) target = $region68
        $region67: #{tpu_custom_call.1} parent=63 // pred_region
          %457 = dma.done %s450, 64
        $region68: #{tpu_custom_call.1} parent=63 // pred_fallthru
          _
        %s458 = sand.u32 %s33, 1
        %s459 = scalar_lea.sflag [#allocation6], %s458
        %s460 = sand.u32 %s81, 1
        %s461 = smul.addr %s460, 4
        %s462 = scalar_lea.vmem [#allocation5], %s461
        // Predicated region
        $region69: #{tpu_custom_call.1} parent=63 // pred_check
          %p463 = pneg %p94
        $region70: #{tpu_custom_call.1} parent=63 // pred_check_branch
          %465 = sbr.rel (%p463) target = $region72
        $region71: #{tpu_custom_call.1} parent=63 // pred_region
          %466 = dma.done %s459, 64
        $region72: #{tpu_custom_call.1} parent=63 // pred_fallthru
          _
        %s467 = sand.u32 %s33, 1
        %s468 = scalar_lea.sflag [#allocation6], %s467
        %s469 = sand.u32 %s107, 1
        %s470 = smul.addr %s469, 4
        %s471 = scalar_lea.vmem [#allocation7], %s470
        // Predicated region
        $region73: #{tpu_custom_call.1} parent=63 // pred_check
          %p472 = pneg %p120
        $region74: #{tpu_custom_call.1} parent=63 // pred_check_branch
          %474 = sbr.rel (%p472) target = $region76
        $region75: #{tpu_custom_call.1} parent=63 // pred_region
          %475 = dma.done %s468, 64
        $region76: #{tpu_custom_call.1} parent=63 // pred_fallthru
          _
        // Predicated region
        $region77: #{tpu_custom_call.1} parent=63 // pred_check
          %p476 = pneg %p141
        $region78: #{tpu_custom_call.1} parent=63 // pred_check_branch
          %478 = sbr.rel (%p476) target = $region80
        $region79: #{tpu_custom_call.1} parent=63 // pred_region
          %479 = dma.done [#allocation9], 256
        $region80: #{tpu_custom_call.1} parent=63 // pred_fallthru
          _
        // Predicated region
        $region81: #{tpu_custom_call.1} parent=63 // pred_check
          %p480 = pneg %p225
        $region82: #{tpu_custom_call.1} parent=63 // pred_check_branch
          %482 = sbr.rel (%p480) target = $region84
        $region83: #{tpu_custom_call.1} parent=63 // pred_region
          %483 = dma.done [#allocation9], 256
        $region84: #{tpu_custom_call.1} parent=63 // pred_fallthru
          _
        // Predicated region
        $region85: #{tpu_custom_call.1} parent=63 // pred_check
          %p484 = pneg %p246
        $region86: #{tpu_custom_call.1} parent=63 // pred_check_branch
          %486 = sbr.rel (%p484) target = $region88
        $region87: #{tpu_custom_call.1} parent=63 // pred_region
          %487 = dma.done [#allocation12], 16
        $region88: #{tpu_custom_call.1} parent=63 // pred_fallthru
          _
        %s488 = sand.u32 %s55, 1
        %s489 = scalar_lea.sflag [#allocation3], %s488
        %s490 = sand.u32 %s55, 1
        %s491 = smul.addr %s490, 4
        %s492 = scalar_lea.vmem [#allocation2], %s491
        %p493 = pneg %p68
        %p494 = pneg %p65
        %s495 = sand.u32 %s33, 1
        %s496 = scalar_lea.sflag [#allocation6], %s495
        %s497 = sand.u32 %s81, 1
        %s498 = smul.addr %s497, 4
        %s499 = scalar_lea.vmem [#allocation5], %s498
        %p500 = pneg %p94
        %p501 = pneg %p91
        %s502 = sand.u32 %s33, 1
        %s503 = scalar_lea.sflag [#allocation6], %s502
        %s504 = sand.u32 %s107, 1
        %s505 = smul.addr %s504, 4
        %s506 = scalar_lea.vmem [#allocation7], %s505
        %p507 = pneg %p120
        %p508 = pneg %p117
        %p509 = pneg %p141
        %p510 = pneg %p138
        %p511 = pneg %p162
        %p512 = pneg %p159
        %p513 = pneg %p183
        %p514 = pneg %p180
        %p515 = pneg %p204
        %p516 = pneg %p201
        %p517 = pneg %p225
        %p518 = pneg %p222
        %p519 = pneg %p246
        %p520 = pneg %p243
        %p521 = pneg %p267
        %p522 = pneg %p264
        %p523 = pneg %p288
        %p524 = pneg %p285
        %p525 = pneg %p316
        %p526 = pneg %p313
        %s527 = sand.u32 %s303, 1
        %s528 = scalar_lea.sflag [#allocation4], %s527
        %s529 = sand.u32 %s303, 1
        %s530 = smul.addr %s529, 8
        %s531 = scalar_lea.vmem [#allocation13], %s530
        %v533 = vld [vmem:[%s453] sm:$0xf]
        %v534 = vld [vmem:[%s462] sm:$0xf]
        %v535 = vld [vmem:[%s471] sm:$0xf]
        %v536 = vld [vmem:[#allocation8] sm:$0xf]
        %v537 = vld [vmem:[#allocation8 + $0x4] sm:$0xf]
        %v538 = vld [vmem:[#allocation8 + $0x8] sm:$0xf]
        %v539 = vld [vmem:[#allocation8 + $0xc] sm:$0xf]
        %v540 = vld [vmem:[%s4] sm:$0x1]
        %v542 = vlaneseq
        %v543 = vshrl.u32 %v542, 7
        %v544 = vsub.s32 0, %v543
        %v545 = vrot.slane %v540, %v544
        %v551 = vunpack.c.l.b16 %v536
        %v552 = vunpack.c.l.b16 %v537
        %v553 = vunpack.c.l.b16 %v538
        %v554 = vunpack.c.l.b16 %v539
        %v555 = vpack.c.b16 %v552, %v551
        %v556 = vpack.c.b16 %v554, %v553
        %vm559 = vcmask 261120
        %v561 = vsel %vm559, %v533, 0
        %563 = vmatprep.subr.bf16.mxu0 0
        %564 = vmatpush1.bf16.msra.mxu0 %v555
        %565 = vmatprep.subr.bf16.mxu0 0
        %566 = vmatpush1.bf16.msra.mxu0 %v556
        %567 = vmatprep.subr.bf16.mxu0 0
        %568 = vmatpush1.bf16.msra.mxu0 0
        %569 = vmatprep.subr.bf16.mxu0 0
        %570 = vmatpush1.bf16.msra.mxu0 0
        %571 = vmatprep.subr.bf16.mxu0 0
        %572 = vmatpush1.bf16.msra.mxu0 0
        %573 = vmatprep.subr.bf16.mxu0 0
        %574 = vmatpush1.bf16.msra.mxu0 0
        %575 = vmatprep.subr.bf16.mxu0 0
        %576 = vmatpush1.bf16.msra.mxu0 0
        %577 = vmatprep.subr.bf16.mxu0 0
        %578 = vmatpush1.bf16.msra.mxu0 0
        %579 = vmatprep.subr.bf16.mxu0 0
        %580 = vmatpush1.bf16.msra.mxu0 0
        %581 = vmatprep.subr.bf16.mxu0 0
        %582 = vmatpush1.bf16.msra.mxu0 0
        %583 = vmatprep.subr.bf16.mxu0 0
        %584 = vmatpush1.bf16.msra.mxu0 0
        %585 = vmatprep.subr.bf16.mxu0 0
        %586 = vmatpush1.bf16.msra.mxu0 0
        %587 = vmatprep.subr.bf16.mxu0 0
        %588 = vmatpush1.bf16.msra.mxu0 0
        %589 = vmatprep.subr.bf16.mxu0 0
        %590 = vmatpush1.bf16.msra.mxu0 0
        %591 = vmatprep.subr.bf16.mxu0 0
        %592 = vmatpush1.bf16.msra.mxu0 0
        %593 = vmatprep.subr.bf16.mxu0 0
        %594 = vmatpush1.bf16.msra.mxu0 0
        %595 = vmatprep.mubr.bf16.mxu0 0
        %596 = vmatmul.mubr.bf16.gmra.mrb[0].mxu0 %v561
        %v597 = vpop.f32.mrb[0].mxu0
        %v598 = vadd.f32 %v545, %v597
        %v599 = vpop.f32.mrb[0].mxu0
        %v600 = vpop.f32.mrb[0].mxu0
        %v601 = vpop.f32.mrb[0].mxu0
        %602 = vdwg.mxu0
        %v603 = vld [vmem:[%s5] sm:$0xf]
        %v604 = vld [vmem:[%s5 + $0x4] sm:$0xf]
        %v605 = vld [vmem:[%s5 + $0x8] sm:$0xf]
        %v606 = vld [vmem:[%s5 + $0xc] sm:$0xf]
        %v607 = vld [vmem:[%s6] sm:$0x1]
        %v609 = vlaneseq
        %v610 = vshrl.u32 %v609, 7
        %v611 = vsub.s32 0, %v610
        %v612 = vrot.slane %v607, %v611
        %v618 = vunpack.c.l.b16 %v603
        %v619 = vunpack.c.l.b16 %v604
        %v620 = vunpack.c.l.b16 %v605
        %v621 = vunpack.c.l.b16 %v606
        %v622 = vpack.c.b16 %v619, %v618
        %v623 = vpack.c.b16 %v621, %v620
        %v627 = vsel %vm559, %v534, 0
        %629 = vmatprep.subr.bf16.mxu0 0
        %630 = vmatpush1.bf16.msra.mxu0 %v622
        %631 = vmatprep.subr.bf16.mxu0 0
        %632 = vmatpush1.bf16.msra.mxu0 %v623
        %633 = vmatprep.subr.bf16.mxu0 0
        %634 = vmatpush1.bf16.msra.mxu0 0
        %635 = vmatprep.subr.bf16.mxu0 0
        %636 = vmatpush1.bf16.msra.mxu0 0
        %637 = vmatprep.subr.bf16.mxu0 0
        %638 = vmatpush1.bf16.msra.mxu0 0
        %639 = vmatprep.subr.bf16.mxu0 0
        %640 = vmatpush1.bf16.msra.mxu0 0
        %641 = vmatprep.subr.bf16.mxu0 0
        %642 = vmatpush1.bf16.msra.mxu0 0
        %643 = vmatprep.subr.bf16.mxu0 0
        %644 = vmatpush1.bf16.msra.mxu0 0
        %645 = vmatprep.subr.bf16.mxu0 0
        %646 = vmatpush1.bf16.msra.mxu0 0
        %647 = vmatprep.subr.bf16.mxu0 0
        %648 = vmatpush1.bf16.msra.mxu0 0
        %649 = vmatprep.subr.bf16.mxu0 0
        %650 = vmatpush1.bf16.msra.mxu0 0
        %651 = vmatprep.subr.bf16.mxu0 0
        %652 = vmatpush1.bf16.msra.mxu0 0
        %653 = vmatprep.subr.bf16.mxu0 0
        %654 = vmatpush1.bf16.msra.mxu0 0
        %655 = vmatprep.subr.bf16.mxu0 0
        %656 = vmatpush1.bf16.msra.mxu0 0
        %657 = vmatprep.subr.bf16.mxu0 0
        %658 = vmatpush1.bf16.msra.mxu0 0
        %659 = vmatprep.subr.bf16.mxu0 0
        %660 = vmatpush1.bf16.msra.mxu0 0
        %661 = vmatprep.mubr.bf16.mxu0 0
        %662 = vmatmul.mubr.bf16.gmra.mrb[0].mxu0 %v627
        %v663 = vpop.f32.mrb[0].mxu0
        %v664 = vadd.f32 %v612, %v663
        %v665 = vpop.f32.mrb[0].mxu0
        %v666 = vpop.f32.mrb[0].mxu0
        %v667 = vpop.f32.mrb[0].mxu0
        %668 = vdwg.mxu0
        %v669 = vld [vmem:[#allocation10] sm:$0xf]
        %v670 = vld [vmem:[#allocation10 + $0x4] sm:$0xf]
        %v671 = vld [vmem:[#allocation10 + $0x8] sm:$0xf]
        %v672 = vld [vmem:[#allocation10 + $0xc] sm:$0xf]
        %v673 = vld [vmem:[#allocation11] sm:$0x1]
        %v675 = vlaneseq
        %v676 = vshrl.u32 %v675, 7
        %v677 = vsub.s32 0, %v676
        %v678 = vrot.slane %v673, %v677
        %v684 = vunpack.c.l.b16 %v669
        %v685 = vunpack.c.l.b16 %v670
        %v686 = vunpack.c.l.b16 %v671
        %v687 = vunpack.c.l.b16 %v672
        %v688 = vpack.c.b16 %v685, %v684
        %v689 = vpack.c.b16 %v687, %v686
        %v693 = vsel %vm559, %v535, 0
        %695 = vmatprep.subr.bf16.mxu0 0
        %696 = vmatpush1.bf16.msra.mxu0 %v688
        %697 = vmatprep.subr.bf16.mxu0 0
        %698 = vmatpush1.bf16.msra.mxu0 %v689
        %699 = vmatprep.subr.bf16.mxu0 0
        %700 = vmatpush1.bf16.msra.mxu0 0
        %701 = vmatprep.subr.bf16.mxu0 0
        %702 = vmatpush1.bf16.msra.mxu0 0
        %703 = vmatprep.subr.bf16.mxu0 0
        %704 = vmatpush1.bf16.msra.mxu0 0
        %705 = vmatprep.subr.bf16.mxu0 0
        %706 = vmatpush1.bf16.msra.mxu0 0
        %707 = vmatprep.subr.bf16.mxu0 0
        %708 = vmatpush1.bf16.msra.mxu0 0
        %709 = vmatprep.subr.bf16.mxu0 0
        %710 = vmatpush1.bf16.msra.mxu0 0
        %711 = vmatprep.subr.bf16.mxu0 0
        %712 = vmatpush1.bf16.msra.mxu0 0
        %713 = vmatprep.subr.bf16.mxu0 0
        %714 = vmatpush1.bf16.msra.mxu0 0
        %715 = vmatprep.subr.bf16.mxu0 0
        %716 = vmatpush1.bf16.msra.mxu0 0
        %717 = vmatprep.subr.bf16.mxu0 0
        %718 = vmatpush1.bf16.msra.mxu0 0
        %719 = vmatprep.subr.bf16.mxu0 0
        %720 = vmatpush1.bf16.msra.mxu0 0
        %721 = vmatprep.subr.bf16.mxu0 0
        %722 = vmatpush1.bf16.msra.mxu0 0
        %723 = vmatprep.subr.bf16.mxu0 0
        %724 = vmatpush1.bf16.msra.mxu0 0
        %725 = vmatprep.subr.bf16.mxu0 0
        %726 = vmatpush1.bf16.msra.mxu0 0
        %727 = vmatprep.mubr.bf16.mxu0 0
        %728 = vmatmul.mubr.bf16.gmra.mrb[0].mxu0 %v693
        %v729 = vpop.f32.mrb[0].mxu0
        %v730 = vadd.f32 %v678, %v729
        %v731 = vpop.f32.mrb[0].mxu0
        %v732 = vpop.f32.mrb[0].mxu0
        %v733 = vpop.f32.mrb[0].mxu0
        %734 = vdwg.mxu0
        %v735 = vmul.f32 %v598, 0.35355338
        %v736 = vpack.c.bf16 %v735, %v735
        %738 = vrot.lane.b32.xlu0 %v736, 120
        %v739 = vpop.permute.xlu0 %738
        %740 = vrot.lane.b32.xlu0 %v736, 112
        %v741 = vpop.permute.xlu0 %740
        %742 = vrot.lane.b32.xlu0 %v736, 104
        %v743 = vpop.permute.xlu0 %742
        %v744 = vpack.c.bf16 %v664, %v664
        %746 = vrot.lane.b32.xlu0 %v744, 120
        %v747 = vpop.permute.xlu0 %746
        %748 = vrot.lane.b32.xlu0 %v744, 112
        %v749 = vpop.permute.xlu0 %748
        %750 = vrot.lane.b32.xlu0 %v744, 104
        %v751 = vpop.permute.xlu0 %750
        %v752 = vpack.c.bf16 %v730, %v730
        %754 = vrot.lane.b32.xlu0 %v752, 120
        %v755 = vpop.permute.xlu0 %754
        %756 = vrot.lane.b32.xlu0 %v752, 112
        %v757 = vpop.permute.xlu0 %756
        %758 = vrot.lane.b32.xlu0 %v752, 104
        %v759 = vpop.permute.xlu0 %758
        %vm760 = vcmask 64512
        %v762 = vsel %vm760, %v736, 0
        %v765 = vsel %vm760, %v744, 0
        %767 = vmatprep.subr.bf16.mxu0 0
        %768 = vmatpush1.bf16.xpose.msra.mxu0 %v765
        %769 = vmatprep.subr.bf16.mxu0 0
        %770 = vmatpush1.bf16.xpose.msra.mxu0 0
        %771 = vmatprep.subr.bf16.mxu0 0
        %772 = vmatpush1.bf16.xpose.msra.mxu0 0
        %773 = vmatprep.subr.bf16.mxu0 0
        %774 = vmatpush1.bf16.xpose.msra.mxu0 0
        %775 = vmatprep.subr.bf16.mxu0 0
        %776 = vmatpush1.bf16.xpose.msra.mxu0 0
        %777 = vmatprep.subr.bf16.mxu0 0
        %778 = vmatpush1.bf16.xpose.msra.mxu0 0
        %779 = vmatprep.subr.bf16.mxu0 0
        %780 = vmatpush1.bf16.xpose.msra.mxu0 0
        %781 = vmatprep.subr.bf16.mxu0 0
        %782 = vmatpush1.bf16.xpose.msra.mxu0 0
        %783 = vmatprep.subr.bf16.mxu0 0
        %784 = vmatpush1.bf16.xpose.msra.mxu0 0
        %785 = vmatprep.subr.bf16.mxu0 0
        %786 = vmatpush1.bf16.xpose.msra.mxu0 0
        %787 = vmatprep.subr.bf16.mxu0 0
        %788 = vmatpush1.bf16.xpose.msra.mxu0 0
        %789 = vmatprep.subr.bf16.mxu0 0
        %790 = vmatpush1.bf16.xpose.msra.mxu0 0
        %791 = vmatprep.subr.bf16.mxu0 0
        %792 = vmatpush1.bf16.xpose.msra.mxu0 0
        %793 = vmatprep.subr.bf16.mxu0 0
        %794 = vmatpush1.bf16.xpose.msra.mxu0 0
        %795 = vmatprep.subr.bf16.mxu0 0
        %796 = vmatpush1.bf16.xpose.msra.mxu0 0
        %797 = vmatprep.subr.bf16.mxu0 0
        %798 = vmatpush1.bf16.xpose.msra.mxu0 0
        %799 = vmatprep.mubr.bf16.mxu0 0
        %800 = vmatmul.mubr.bf16.gmra.mrb[0].mxu0 %v762
        %v801 = vpop.f32.mrb[0].mxu0
        %v802 = vadd.f32 0.0, %v801
        %v803 = vpop.f32.mrb[0].mxu0
        %v804 = vpop.f32.mrb[0].mxu0
        %v805 = vpop.f32.mrb[0].mxu0
        %806 = vdwg.mxu0
        %v808 = vsel %vm760, %v739, 0
        %v811 = vsel %vm760, %v747, 0
        %813 = vmatprep.subr.bf16.mxu0 0
        %814 = vmatpush1.bf16.xpose.msra.mxu0 %v811
        %815 = vmatprep.subr.bf16.mxu0 0
        %816 = vmatpush1.bf16.xpose.msra.mxu0 0
        %817 = vmatprep.subr.bf16.mxu0 0
        %818 = vmatpush1.bf16.xpose.msra.mxu0 0
        %819 = vmatprep.subr.bf16.mxu0 0
        %820 = vmatpush1.bf16.xpose.msra.mxu0 0
        %821 = vmatprep.subr.bf16.mxu0 0
        %822 = vmatpush1.bf16.xpose.msra.mxu0 0
        %823 = vmatprep.subr.bf16.mxu0 0
        %824 = vmatpush1.bf16.xpose.msra.mxu0 0
        %825 = vmatprep.subr.bf16.mxu0 0
        %826 = vmatpush1.bf16.xpose.msra.mxu0 0
        %827 = vmatprep.subr.bf16.mxu0 0
        %828 = vmatpush1.bf16.xpose.msra.mxu0 0
        %829 = vmatprep.subr.bf16.mxu0 0
        %830 = vmatpush1.bf16.xpose.msra.mxu0 0
        %831 = vmatprep.subr.bf16.mxu0 0
        %832 = vmatpush1.bf16.xpose.msra.mxu0 0
        %833 = vmatprep.subr.bf16.mxu0 0
        %834 = vmatpush1.bf16.xpose.msra.mxu0 0
        %835 = vmatprep.subr.bf16.mxu0 0
        %836 = vmatpush1.bf16.xpose.msra.mxu0 0
        %837 = vmatprep.subr.bf16.mxu0 0
        %838 = vmatpush1.bf16.xpose.msra.mxu0 0
        %839 = vmatprep.subr.bf16.mxu0 0
        %840 = vmatpush1.bf16.xpose.msra.mxu0 0
        %841 = vmatprep.subr.bf16.mxu0 0
        %842 = vmatpush1.bf16.xpose.msra.mxu0 0
        %843 = vmatprep.subr.bf16.mxu0 0
        %844 = vmatpush1.bf16.xpose.msra.mxu0 0
        %845 = vmatprep.mubr.bf16.mxu0 0
        %846 = vmatmul.mubr.bf16.gmra.mrb[0].mxu0 %v808
        %v847 = vpop.f32.mrb[0].mxu0
        %v848 = vadd.f32 0.0, %v847
        %v849 = vpop.f32.mrb[0].mxu0
        %v850 = vpop.f32.mrb[0].mxu0
        %v851 = vpop.f32.mrb[0].mxu0
        %852 = vdwg.mxu0
        %v854 = vsel %vm760, %v741, 0
        %v857 = vsel %vm760, %v749, 0
        %859 = vmatprep.subr.bf16.mxu0 0
        %860 = vmatpush1.bf16.xpose.msra.mxu0 %v857
        %861 = vmatprep.subr.bf16.mxu0 0
        %862 = vmatpush1.bf16.xpose.msra.mxu0 0
        %863 = vmatprep.subr.bf16.mxu0 0
        %864 = vmatpush1.bf16.xpose.msra.mxu0 0
        %865 = vmatprep.subr.bf16.mxu0 0
        %866 = vmatpush1.bf16.xpose.msra.mxu0 0
        %867 = vmatprep.subr.bf16.mxu0 0
        %868 = vmatpush1.bf16.xpose.msra.mxu0 0
        %869 = vmatprep.subr.bf16.mxu0 0
        %870 = vmatpush1.bf16.xpose.msra.mxu0 0
        %871 = vmatprep.subr.bf16.mxu0 0
        %872 = vmatpush1.bf16.xpose.msra.mxu0 0
        %873 = vmatprep.subr.bf16.mxu0 0
        %874 = vmatpush1.bf16.xpose.msra.mxu0 0
        %875 = vmatprep.subr.bf16.mxu0 0
        %876 = vmatpush1.bf16.xpose.msra.mxu0 0
        %877 = vmatprep.subr.bf16.mxu0 0
        %878 = vmatpush1.bf16.xpose.msra.mxu0 0
        %879 = vmatprep.subr.bf16.mxu0 0
        %880 = vmatpush1.bf16.xpose.msra.mxu0 0
        %881 = vmatprep.subr.bf16.mxu0 0
        %882 = vmatpush1.bf16.xpose.msra.mxu0 0
        %883 = vmatprep.subr.bf16.mxu0 0
        %884 = vmatpush1.bf16.xpose.msra.mxu0 0
        %885 = vmatprep.subr.bf16.mxu0 0
        %886 = vmatpush1.bf16.xpose.msra.mxu0 0
        %887 = vmatprep.subr.bf16.mxu0 0
        %888 = vmatpush1.bf16.xpose.msra.mxu0 0
        %889 = vmatprep.subr.bf16.mxu0 0
        %890 = vmatpush1.bf16.xpose.msra.mxu0 0
        %891 = vmatprep.mubr.bf16.mxu0 0
        %892 = vmatmul.mubr.bf16.gmra.mrb[0].mxu0 %v854
        %v893 = vpop.f32.mrb[0].mxu0
        %v894 = vadd.f32 0.0, %v893
        %v895 = vpop.f32.mrb[0].mxu0
        %v896 = vpop.f32.mrb[0].mxu0
        %v897 = vpop.f32.mrb[0].mxu0
        %898 = vdwg.mxu0
        %v900 = vsel %vm760, %v743, 0
        %v903 = vsel %vm760, %v751, 0
        %905 = vmatprep.subr.bf16.mxu0 0
        %906 = vmatpush1.bf16.xpose.msra.mxu0 %v903
        %907 = vmatprep.subr.bf16.mxu0 0
        %908 = vmatpush1.bf16.xpose.msra.mxu0 0
        %909 = vmatprep.subr.bf16.mxu0 0
        %910 = vmatpush1.bf16.xpose.msra.mxu0 0
        %911 = vmatprep.subr.bf16.mxu0 0
        %912 = vmatpush1.bf16.xpose.msra.mxu0 0
        %913 = vmatprep.subr.bf16.mxu0 0
        %914 = vmatpush1.bf16.xpose.msra.mxu0 0
        %915 = vmatprep.subr.bf16.mxu0 0
        %916 = vmatpush1.bf16.xpose.msra.mxu0 0
        %917 = vmatprep.subr.bf16.mxu0 0
        %918 = vmatpush1.bf16.xpose.msra.mxu0 0
        %919 = vmatprep.subr.bf16.mxu0 0
        %920 = vmatpush1.bf16.xpose.msra.mxu0 0
        %921 = vmatprep.subr.bf16.mxu0 0
        %922 = vmatpush1.bf16.xpose.msra.mxu0 0
        %923 = vmatprep.subr.bf16.mxu0 0
        %924 = vmatpush1.bf16.xpose.msra.mxu0 0
        %925 = vmatprep.subr.bf16.mxu0 0
        %926 = vmatpush1.bf16.xpose.msra.mxu0 0
        %927 = vmatprep.subr.bf16.mxu0 0
        %928 = vmatpush1.bf16.xpose.msra.mxu0 0
        %929 = vmatprep.subr.bf16.mxu0 0
        %930 = vmatpush1.bf16.xpose.msra.mxu0 0
        %931 = vmatprep.subr.bf16.mxu0 0
        %932 = vmatpush1.bf16.xpose.msra.mxu0 0
        %933 = vmatprep.subr.bf16.mxu0 0
        %934 = vmatpush1.bf16.xpose.msra.mxu0 0
        %935 = vmatprep.subr.bf16.mxu0 0
        %936 = vmatpush1.bf16.xpose.msra.mxu0 0
        %937 = vmatprep.mubr.bf16.mxu0 0
        %938 = vmatmul.mubr.bf16.gmra.mrb[0].mxu0 %v900
        %v939 = vpop.f32.mrb[0].mxu0
        %v940 = vadd.f32 0.0, %v939
        %v941 = vpop.f32.mrb[0].mxu0
        %v942 = vpop.f32.mrb[0].mxu0
        %v943 = vpop.f32.mrb[0].mxu0
        %944 = vdwg.mxu0
        %v945 = vsel %vm760, %v802, -inf
        %946 = vmax.xlane.f32.xlu0 %v945
        %v947 = vpop.xlane.xlu0 %946
        %v948 = vsel %vm760, %v848, -inf
        %949 = vmax.xlane.f32.xlu0 %v948
        %v950 = vpop.xlane.xlu0 %949
        %v951 = vsel %vm760, %v894, -inf
        %952 = vmax.xlane.f32.xlu0 %v951
        %v953 = vpop.xlane.xlu0 %952
        %v954 = vsel %vm760, %v940, -inf
        %955 = vmax.xlane.f32.xlu0 %v954
        %v956 = vpop.xlane.xlu0 %955
        %v957 = vsub.f32 %v802, %v947
        %v958 = vsub.f32 %v848, %v950
        %v959 = vsub.f32 %v894, %v953
        %v960 = vsub.f32 %v940, %v956
        %v961 = vmul.f32 %v957, 1.442695
        %v962 = vpow.pop %v961
        %v963 = vmul.f32 %v958, 1.442695
        %v964 = vpow.pop %v963
        %v965 = vmul.f32 %v959, 1.442695
        %v966 = vpow.pop %v965
        %v967 = vmul.f32 %v960, 1.442695
        %v968 = vpow.pop %v967
        %v969 = vsel %vm760, %v962, 0.0
        %970 = vadd.xlane.f32.xlu0 %v969
        %v971 = vpop.xlane.xlu0 %970
        %v972 = vsel %vm760, %v964, 0.0
        %973 = vadd.xlane.f32.xlu0 %v972
        %v974 = vpop.xlane.xlu0 %973
        %v975 = vsel %vm760, %v966, 0.0
        %976 = vadd.xlane.f32.xlu0 %v975
        %v977 = vpop.xlane.xlu0 %976
        %v978 = vsel %vm760, %v968, 0.0
        %979 = vadd.xlane.f32.xlu0 %v978
        %v980 = vpop.xlane.xlu0 %979
        %v981 = vrcp.pop %v971
        %v982 = vrcp.pop %v974
        %v983 = vrcp.pop %v977
        %v984 = vrcp.pop %v980
        %v985 = vmul.f32 %v962, %v981
        %v986 = vmul.f32 %v964, %v982
        %v987 = vmul.f32 %v966, %v983
        %v988 = vmul.f32 %v968, %v984
        %v989 = vpack.c.bf16 %v985, %v985
        %v990 = vpack.c.bf16 %v986, %v986
        %v991 = vpack.c.bf16 %v987, %v987
        %v992 = vpack.c.bf16 %v988, %v988
        %v994 = vsel %vm760, %v989, 0
        %vm996 = vcmask 1043456
        %v998 = vsel %vm996, %v752, 0
        %1000 = vmatprep.subr.bf16.mxu0 0
        %1001 = vmatpush1.bf16.msra.mxu0 %v998
        %1002 = vmatprep.subr.bf16.mxu0 0
        %1003 = vmatpush1.bf16.msra.mxu0 0
        %1004 = vmatprep.subr.bf16.mxu0 0
        %1005 = vmatpush1.bf16.msra.mxu0 0
        %1006 = vmatprep.subr.bf16.mxu0 0
        %1007 = vmatpush1.bf16.msra.mxu0 0
        %1008 = vmatprep.subr.bf16.mxu0 0
        %1009 = vmatpush1.bf16.msra.mxu0 0
        %1010 = vmatprep.subr.bf16.mxu0 0
        %1011 = vmatpush1.bf16.msra.mxu0 0
        %1012 = vmatprep.subr.bf16.mxu0 0
        %1013 = vmatpush1.bf16.msra.mxu0 0
        %1014 = vmatprep.subr.bf16.mxu0 0
        %1015 = vmatpush1.bf16.msra.mxu0 0
        %1016 = vmatprep.subr.bf16.mxu0 0
        %1017 = vmatpush1.bf16.msra.mxu0 0
        %1018 = vmatprep.subr.bf16.mxu0 0
        %1019 = vmatpush1.bf16.msra.mxu0 0
        %1020 = vmatprep.subr.bf16.mxu0 0
        %1021 = vmatpush1.bf16.msra.mxu0 0
        %1022 = vmatprep.subr.bf16.mxu0 0
        %1023 = vmatpush1.bf16.msra.mxu0 0
        %1024 = vmatprep.subr.bf16.mxu0 0
        %1025 = vmatpush1.bf16.msra.mxu0 0
        %1026 = vmatprep.subr.bf16.mxu0 0
        %1027 = vmatpush1.bf16.msra.mxu0 0
        %1028 = vmatprep.subr.bf16.mxu0 0
        %1029 = vmatpush1.bf16.msra.mxu0 0
        %1030 = vmatprep.subr.bf16.mxu0 0
        %1031 = vmatpush1.bf16.msra.mxu0 0
        %1032 = vmatprep.mubr.bf16.mxu0 0
        %1033 = vmatmul.mubr.bf16.gmra.mrb[0].mxu0 %v994
        %v1034 = vpop.f32.mrb[0].mxu0
        %v1035 = vadd.f32 0.0, %v1034
        %v1036 = vpop.f32.mrb[0].mxu0
        %v1037 = vpop.f32.mrb[0].mxu0
        %v1038 = vpop.f32.mrb[0].mxu0
        %1039 = vdwg.mxu0
        %v1041 = vsel %vm760, %v990, 0
        %v1044 = vsel %vm996, %v755, 0
        %1046 = vmatprep.subr.bf16.mxu0 0
        %1047 = vmatpush1.bf16.msra.mxu0 %v1044
        %1048 = vmatprep.subr.bf16.mxu0 0
        %1049 = vmatpush1.bf16.msra.mxu0 0
        %1050 = vmatprep.subr.bf16.mxu0 0
        %1051 = vmatpush1.bf16.msra.mxu0 0
        %1052 = vmatprep.subr.bf16.mxu0 0
        %1053 = vmatpush1.bf16.msra.mxu0 0
        %1054 = vmatprep.subr.bf16.mxu0 0
        %1055 = vmatpush1.bf16.msra.mxu0 0
        %1056 = vmatprep.subr.bf16.mxu0 0
        %1057 = vmatpush1.bf16.msra.mxu0 0
        %1058 = vmatprep.subr.bf16.mxu0 0
        %1059 = vmatpush1.bf16.msra.mxu0 0
        %1060 = vmatprep.subr.bf16.mxu0 0
        %1061 = vmatpush1.bf16.msra.mxu0 0
        %1062 = vmatprep.subr.bf16.mxu0 0
        %1063 = vmatpush1.bf16.msra.mxu0 0
        %1064 = vmatprep.subr.bf16.mxu0 0
        %1065 = vmatpush1.bf16.msra.mxu0 0
        %1066 = vmatprep.subr.bf16.mxu0 0
        %1067 = vmatpush1.bf16.msra.mxu0 0
        %1068 = vmatprep.subr.bf16.mxu0 0
        %1069 = vmatpush1.bf16.msra.mxu0 0
        %1070 = vmatprep.subr.bf16.mxu0 0
        %1071 = vmatpush1.bf16.msra.mxu0 0
        %1072 = vmatprep.subr.bf16.mxu0 0
        %1073 = vmatpush1.bf16.msra.mxu0 0
        %1074 = vmatprep.subr.bf16.mxu0 0
        %1075 = vmatpush1.bf16.msra.mxu0 0
        %1076 = vmatprep.subr.bf16.mxu0 0
        %1077 = vmatpush1.bf16.msra.mxu0 0
        %1078 = vmatprep.mubr.bf16.mxu0 0
        %1079 = vmatmul.mubr.bf16.gmra.mrb[0].mxu0 %v1041
        %v1080 = vpop.f32.mrb[0].mxu0
        %v1081 = vadd.f32 0.0, %v1080
        %v1082 = vpop.f32.mrb[0].mxu0
        %v1083 = vpop.f32.mrb[0].mxu0
        %v1084 = vpop.f32.mrb[0].mxu0
        %1085 = vdwg.mxu0
        %v1087 = vsel %vm760, %v991, 0
        %v1090 = vsel %vm996, %v757, 0
        %1092 = vmatprep.subr.bf16.mxu0 0
        %1093 = vmatpush1.bf16.msra.mxu0 %v1090
        %1094 = vmatprep.subr.bf16.mxu0 0
        %1095 = vmatpush1.bf16.msra.mxu0 0
        %1096 = vmatprep.subr.bf16.mxu0 0
        %1097 = vmatpush1.bf16.msra.mxu0 0
        %1098 = vmatprep.subr.bf16.mxu0 0
        %1099 = vmatpush1.bf16.msra.mxu0 0
        %1100 = vmatprep.subr.bf16.mxu0 0
        %1101 = vmatpush1.bf16.msra.mxu0 0
        %1102 = vmatprep.subr.bf16.mxu0 0
        %1103 = vmatpush1.bf16.msra.mxu0 0
        %1104 = vmatprep.subr.bf16.mxu0 0
        %1105 = vmatpush1.bf16.msra.mxu0 0
        %1106 = vmatprep.subr.bf16.mxu0 0
        %1107 = vmatpush1.bf16.msra.mxu0 0
        %1108 = vmatprep.subr.bf16.mxu0 0
        %1109 = vmatpush1.bf16.msra.mxu0 0
        %1110 = vmatprep.subr.bf16.mxu0 0
        %1111 = vmatpush1.bf16.msra.mxu0 0
        %1112 = vmatprep.subr.bf16.mxu0 0
        %1113 = vmatpush1.bf16.msra.mxu0 0
        %1114 = vmatprep.subr.bf16.mxu0 0
        %1115 = vmatpush1.bf16.msra.mxu0 0
        %1116 = vmatprep.subr.bf16.mxu0 0
        %1117 = vmatpush1.bf16.msra.mxu0 0
        %1118 = vmatprep.subr.bf16.mxu0 0
        %1119 = vmatpush1.bf16.msra.mxu0 0
        %1120 = vmatprep.subr.bf16.mxu0 0
        %1121 = vmatpush1.bf16.msra.mxu0 0
        %1122 = vmatprep.subr.bf16.mxu0 0
        %1123 = vmatpush1.bf16.msra.mxu0 0
        %1124 = vmatprep.mubr.bf16.mxu0 0
        %1125 = vmatmul.mubr.bf16.gmra.mrb[0].mxu0 %v1087
        %v1126 = vpop.f32.mrb[0].mxu0
        %v1127 = vadd.f32 0.0, %v1126
        %v1128 = vpop.f32.mrb[0].mxu0
        %v1129 = vpop.f32.mrb[0].mxu0
        %v1130 = vpop.f32.mrb[0].mxu0
        %1131 = vdwg.mxu0
        %v1133 = vsel %vm760, %v992, 0
        %v1136 = vsel %vm996, %v759, 0
        %1138 = vmatprep.subr.bf16.mxu0 0
        %1139 = vmatpush1.bf16.msra.mxu0 %v1136
        %1140 = vmatprep.subr.bf16.mxu0 0
        %1141 = vmatpush1.bf16.msra.mxu0 0
        %1142 = vmatprep.subr.bf16.mxu0 0
        %1143 = vmatpush1.bf16.msra.mxu0 0
        %1144 = vmatprep.subr.bf16.mxu0 0
        %1145 = vmatpush1.bf16.msra.mxu0 0
        %1146 = vmatprep.subr.bf16.mxu0 0
        %1147 = vmatpush1.bf16.msra.mxu0 0
        %1148 = vmatprep.subr.bf16.mxu0 0
        %1149 = vmatpush1.bf16.msra.mxu0 0
        %1150 = vmatprep.subr.bf16.mxu0 0
        %1151 = vmatpush1.bf16.msra.mxu0 0
        %1152 = vmatprep.subr.bf16.mxu0 0
        %1153 = vmatpush1.bf16.msra.mxu0 0
        %1154 = vmatprep.subr.bf16.mxu0 0
        %1155 = vmatpush1.bf16.msra.mxu0 0
        %1156 = vmatprep.subr.bf16.mxu0 0
        %1157 = vmatpush1.bf16.msra.mxu0 0
        %1158 = vmatprep.subr.bf16.mxu0 0
        %1159 = vmatpush1.bf16.msra.mxu0 0
        %1160 = vmatprep.subr.bf16.mxu0 0
        %1161 = vmatpush1.bf16.msra.mxu0 0
        %1162 = vmatprep.subr.bf16.mxu0 0
        %1163 = vmatpush1.bf16.msra.mxu0 0
        %1164 = vmatprep.subr.bf16.mxu0 0
        %1165 = vmatpush1.bf16.msra.mxu0 0
        %1166 = vmatprep.subr.bf16.mxu0 0
        %1167 = vmatpush1.bf16.msra.mxu0 0
        %1168 = vmatprep.subr.bf16.mxu0 0
        %1169 = vmatpush1.bf16.msra.mxu0 0
        %1170 = vmatprep.mubr.bf16.mxu0 0
        %1171 = vmatmul.mubr.bf16.gmra.mrb[0].mxu0 %v1133
        %v1172 = vpop.f32.mrb[0].mxu0
        %v1173 = vadd.f32 0.0, %v1172
        %v1174 = vpop.f32.mrb[0].mxu0
        %v1175 = vpop.f32.mrb[0].mxu0
        %v1176 = vpop.f32.mrb[0].mxu0
        %1177 = vdwg.mxu0
        %v1178 = vpack.c.bf16 %v1035, %v1035
        %v1179 = vpack.c.bf16 %v1081, %v1081
        %v1180 = vpack.c.bf16 %v1127, %v1127
        %v1181 = vpack.c.bf16 %v1173, %v1173
        %v1182 = vld [vmem:[%s9] sm:$0xf]
        %s1183 = scalar_lea.vmem %s9, 4
        %v1184 = vld [vmem:[%s1183] sm:$0xf]
        %v1186 = vsel %vm760, %v1179, 0
        %v1189 = vsel %vm996, %v1184, 0
        %1191 = vmatprep.subr.bf16.mxu0 0
        %1192 = vmatpush1.bf16.msra.mxu0 %v1189
        %1193 = vmatprep.subr.bf16.mxu0 0
        %1194 = vmatpush1.bf16.msra.mxu0 0
        %1195 = vmatprep.subr.bf16.mxu0 0
        %1196 = vmatpush1.bf16.msra.mxu0 0
        %1197 = vmatprep.subr.bf16.mxu0 0
        %1198 = vmatpush1.bf16.msra.mxu0 0
        %1199 = vmatprep.subr.bf16.mxu0 0
        %1200 = vmatpush1.bf16.msra.mxu0 0
        %1201 = vmatprep.subr.bf16.mxu0 0
        %1202 = vmatpush1.bf16.msra.mxu0 0
        %1203 = vmatprep.subr.bf16.mxu0 0
        %1204 = vmatpush1.bf16.msra.mxu0 0
        %1205 = vmatprep.subr.bf16.mxu0 0
        %1206 = vmatpush1.bf16.msra.mxu0 0
        %1207 = vmatprep.subr.bf16.mxu0 0
        %1208 = vmatpush1.bf16.msra.mxu0 0
        %1209 = vmatprep.subr.bf16.mxu0 0
        %1210 = vmatpush1.bf16.msra.mxu0 0
        %1211 = vmatprep.subr.bf16.mxu0 0
        %1212 = vmatpush1.bf16.msra.mxu0 0
        %1213 = vmatprep.subr.bf16.mxu0 0
        %1214 = vmatpush1.bf16.msra.mxu0 0
        %1215 = vmatprep.subr.bf16.mxu0 0
        %1216 = vmatpush1.bf16.msra.mxu0 0
        %1217 = vmatprep.subr.bf16.mxu0 0
        %1218 = vmatpush1.bf16.msra.mxu0 0
        %1219 = vmatprep.subr.bf16.mxu0 0
        %1220 = vmatpush1.bf16.msra.mxu0 0
        %1221 = vmatprep.subr.bf16.mxu0 0
        %1222 = vmatpush1.bf16.msra.mxu0 0
        %1223 = vmatprep.mubr.bf16.mxu0 0
        %1224 = vmatmul.mubr.bf16.gmra.mrb[0].mxu0 %v1186
        %v1225 = vpop.f32.mrb[0].mxu0
        %v1226 = vadd.f32 0.0, %v1225
        %v1227 = vpop.f32.mrb[0].mxu0
        %v1228 = vpop.f32.mrb[0].mxu0
        %v1229 = vpop.f32.mrb[0].mxu0
        %1230 = vdwg.mxu0
        %v1232 = vsel %vm760, %v1178, 0
        %v1235 = vsel %vm996, %v1182, 0
        %1237 = vmatprep.subr.bf16.mxu0 0
        %1238 = vmatpush1.bf16.msra.mxu0 %v1235
        %1239 = vmatprep.subr.bf16.mxu0 0
        %1240 = vmatpush1.bf16.msra.mxu0 0
        %1241 = vmatprep.subr.bf16.mxu0 0
        %1242 = vmatpush1.bf16.msra.mxu0 0
        %1243 = vmatprep.subr.bf16.mxu0 0
        %1244 = vmatpush1.bf16.msra.mxu0 0
        %1245 = vmatprep.subr.bf16.mxu0 0
        %1246 = vmatpush1.bf16.msra.mxu0 0
        %1247 = vmatprep.subr.bf16.mxu0 0
        %1248 = vmatpush1.bf16.msra.mxu0 0
        %1249 = vmatprep.subr.bf16.mxu0 0
        %1250 = vmatpush1.bf16.msra.mxu0 0
        %1251 = vmatprep.subr.bf16.mxu0 0
        %1252 = vmatpush1.bf16.msra.mxu0 0
        %1253 = vmatprep.subr.bf16.mxu0 0
        %1254 = vmatpush1.bf16.msra.mxu0 0
        %1255 = vmatprep.subr.bf16.mxu0 0
        %1256 = vmatpush1.bf16.msra.mxu0 0
        %1257 = vmatprep.subr.bf16.mxu0 0
        %1258 = vmatpush1.bf16.msra.mxu0 0
        %1259 = vmatprep.subr.bf16.mxu0 0
        %1260 = vmatpush1.bf16.msra.mxu0 0
        %1261 = vmatprep.subr.bf16.mxu0 0
        %1262 = vmatpush1.bf16.msra.mxu0 0
        %1263 = vmatprep.subr.bf16.mxu0 0
        %1264 = vmatpush1.bf16.msra.mxu0 0
        %1265 = vmatprep.subr.bf16.mxu0 0
        %1266 = vmatpush1.bf16.msra.mxu0 0
        %1267 = vmatprep.subr.bf16.mxu0 0
        %1268 = vmatpush1.bf16.msra.mxu0 0
        %1269 = vmatprep.mubr.bf16.mxu0 0
        %1270 = vmatmul.mubr.bf16.gmra.mrb[0].mxu0 %v1232
        %v1271 = vpop.f32.mrb[0].mxu0
        %v1272 = vadd.f32 %v1226, %v1271
        %v1273 = vpop.f32.mrb[0].mxu0
        %v1274 = vpop.f32.mrb[0].mxu0
        %v1275 = vpop.f32.mrb[0].mxu0
        %1276 = vdwg.mxu0
        %s1277 = scalar_lea.vmem %s9, 8
        %v1278 = vld [vmem:[%s1277] sm:$0xf]
        %v1280 = vsel %vm760, %v1180, 0
        %v1283 = vsel %vm996, %v1278, 0
        %1285 = vmatprep.subr.bf16.mxu0 0
        %1286 = vmatpush1.bf16.msra.mxu0 %v1283
        %1287 = vmatprep.subr.bf16.mxu0 0
        %1288 = vmatpush1.bf16.msra.mxu0 0
        %1289 = vmatprep.subr.bf16.mxu0 0
        %1290 = vmatpush1.bf16.msra.mxu0 0
        %1291 = vmatprep.subr.bf16.mxu0 0
        %1292 = vmatpush1.bf16.msra.mxu0 0
        %1293 = vmatprep.subr.bf16.mxu0 0
        %1294 = vmatpush1.bf16.msra.mxu0 0
        %1295 = vmatprep.subr.bf16.mxu0 0
        %1296 = vmatpush1.bf16.msra.mxu0 0
        %1297 = vmatprep.subr.bf16.mxu0 0
        %1298 = vmatpush1.bf16.msra.mxu0 0
        %1299 = vmatprep.subr.bf16.mxu0 0
        %1300 = vmatpush1.bf16.msra.mxu0 0
        %1301 = vmatprep.subr.bf16.mxu0 0
        %1302 = vmatpush1.bf16.msra.mxu0 0
        %1303 = vmatprep.subr.bf16.mxu0 0
        %1304 = vmatpush1.bf16.msra.mxu0 0
        %1305 = vmatprep.subr.bf16.mxu0 0
        %1306 = vmatpush1.bf16.msra.mxu0 0
        %1307 = vmatprep.subr.bf16.mxu0 0
        %1308 = vmatpush1.bf16.msra.mxu0 0
        %1309 = vmatprep.subr.bf16.mxu0 0
        %1310 = vmatpush1.bf16.msra.mxu0 0
        %1311 = vmatprep.subr.bf16.mxu0 0
        %1312 = vmatpush1.bf16.msra.mxu0 0
        %1313 = vmatprep.subr.bf16.mxu0 0
        %1314 = vmatpush1.bf16.msra.mxu0 0
        %1315 = vmatprep.subr.bf16.mxu0 0
        %1316 = vmatpush1.bf16.msra.mxu0 0
        %1317 = vmatprep.mubr.bf16.mxu0 0
        %1318 = vmatmul.mubr.bf16.gmra.mrb[0].mxu0 %v1280
        %v1319 = vpop.f32.mrb[0].mxu0
        %v1320 = vadd.f32 0.0, %v1319
        %v1321 = vpop.f32.mrb[0].mxu0
        %v1322 = vpop.f32.mrb[0].mxu0
        %v1323 = vpop.f32.mrb[0].mxu0
        %1324 = vdwg.mxu0
        %v1325 = vadd.f32 %v1272, %v1320
        %s1326 = scalar_lea.vmem %s9, 12
        %v1327 = vld [vmem:[%s1326] sm:$0xf]
        %v1329 = vsel %vm760, %v1181, 0
        %v1332 = vsel %vm996, %v1327, 0
        %1334 = vmatprep.subr.bf16.mxu0 0
        %1335 = vmatpush1.bf16.msra.mxu0 %v1332
        %1336 = vmatprep.subr.bf16.mxu0 0
        %1337 = vmatpush1.bf16.msra.mxu0 0
        %1338 = vmatprep.subr.bf16.mxu0 0
        %1339 = vmatpush1.bf16.msra.mxu0 0
        %1340 = vmatprep.subr.bf16.mxu0 0
        %1341 = vmatpush1.bf16.msra.mxu0 0
        %1342 = vmatprep.subr.bf16.mxu0 0
        %1343 = vmatpush1.bf16.msra.mxu0 0
        %1344 = vmatprep.subr.bf16.mxu0 0
        %1345 = vmatpush1.bf16.msra.mxu0 0
        %1346 = vmatprep.subr.bf16.mxu0 0
        %1347 = vmatpush1.bf16.msra.mxu0 0
        %1348 = vmatprep.subr.bf16.mxu0 0
        %1349 = vmatpush1.bf16.msra.mxu0 0
        %1350 = vmatprep.subr.bf16.mxu0 0
        %1351 = vmatpush1.bf16.msra.mxu0 0
        %1352 = vmatprep.subr.bf16.mxu0 0
        %1353 = vmatpush1.bf16.msra.mxu0 0
        %1354 = vmatprep.subr.bf16.mxu0 0
        %1355 = vmatpush1.bf16.msra.mxu0 0
        %1356 = vmatprep.subr.bf16.mxu0 0
        %1357 = vmatpush1.bf16.msra.mxu0 0
        %1358 = vmatprep.subr.bf16.mxu0 0
        %1359 = vmatpush1.bf16.msra.mxu0 0
        %1360 = vmatprep.subr.bf16.mxu0 0
        %1361 = vmatpush1.bf16.msra.mxu0 0
        %1362 = vmatprep.subr.bf16.mxu0 0
        %1363 = vmatpush1.bf16.msra.mxu0 0
        %1364 = vmatprep.subr.bf16.mxu0 0
        %1365 = vmatpush1.bf16.msra.mxu0 0
        %1366 = vmatprep.mubr.bf16.mxu0 0
        %1367 = vmatmul.mubr.bf16.gmra.mrb[0].mxu0 %v1329
        %v1368 = vpop.f32.mrb[0].mxu0
        %v1369 = vadd.f32 0.0, %v1368
        %v1370 = vpop.f32.mrb[0].mxu0
        %v1371 = vpop.f32.mrb[0].mxu0
        %v1372 = vpop.f32.mrb[0].mxu0
        %1373 = vdwg.mxu0
        %v1374 = vadd.f32 %v1325, %v1369
        %v1375 = vld [vmem:[%s10] sm:$0x1]
        %v1377 = vlaneseq
        %v1378 = vshrl.u32 %v1377, 7
        %v1379 = vsub.s32 0, %v1378
        %v1380 = vrot.slane %v1375, %v1379
        %v1382 = vadd.f32 %v1374, %v1380
        %1383 = vst.msk [vmem:[%s531] sm:$0xff] %vm559, %v1382
        %s1384 = sand.u32 %s303, 1
        %s1385 = scalar_lea.sflag [#allocation4], %s1384
        %s1386 = sand.u32 %s303, 1
        %s1387 = smul.addr %s1386, 8
        %s1388 = scalar_lea.vmem [#allocation13], %s1387
        // Predicated region
        $region89: #{tpu_custom_call.1} parent=63 // pred_check
          %p1389 = pneg %p313
        $region90: #{tpu_custom_call.1} parent=63 // pred_check_branch
          %1391 = sbr.rel (%p1389) target = $region92
        $region91: #{tpu_custom_call.1} parent=63 // pred_region
          %s1393 = ssub.s32 128, 128
          %1394 = vsyncadd %s1385, %s1393
          %s1395 = sadd.s32 %s38, %s37
          %s1396 = smul.addr %s1395, 128
          %s1397 = scalar_lea.hbm %s11, %s1396
          %s1399 = sshll.u32 %s1388, 4
          %s1400 = int_to_ptr.vmem [resolvable:$true] %s1399
          %1402 = dma.vmem_to_hbm [thread:$0]  %s1400, 128, %s1397, %s1385
        $region92: #{tpu_custom_call.1} parent=63 // pred_fallthru
          _
      $region64: #{tpu_custom_call.1} parent=5 // pred_fallthru
        _
      %p1403 = scmp.le.s32.totalorder 2, %s28
      // Predicated region
      $region93: #{tpu_custom_call.1} parent=5 // pred_check
        %p1404 = pneg %p1403
      $region94: #{tpu_custom_call.1} parent=5 // pred_check_branch
        %1406 = sbr.rel (%p1404) target = $region96
      $region95: #{tpu_custom_call.1} parent=5 // pred_region
        %s1407 = ssub.s32 %s28, 2
        // Predicated region
        $region97: #{tpu_custom_call.1} parent=95 // pred_check
          %p1408 = pneg %p319
        $region98: #{tpu_custom_call.1} parent=95 // pred_check_branch
          %1410 = sbr.rel (%p1408) target = $region100
        $region99: #{tpu_custom_call.1} parent=95 // pred_region
          %s1411 = sand.u32 %s304, 1
          %s1412 = scalar_lea.sflag [#allocation4], %s1411
          %s1413 = sand.u32 %s304, 1
          %s1414 = smul.addr %s1413, 8
          %s1415 = scalar_lea.vmem [#allocation13], %s1414
          %1416 = dma.done %s1412, 128
        $region100: #{tpu_custom_call.1} parent=95 // pred_fallthru
          _
      $region96: #{tpu_custom_call.1} parent=5 // pred_fallthru
        _
    $region6: #{tpu_custom_call.1} parent=1 // loop_footer
      %s32 = sadd.s32 1, %s28
    $region7: #{tpu_custom_call.1} parent=1 // loop_footer_branch
      %27 = sbr.rel target = $region3
    $region8: #{tpu_custom_call.1} parent=1 // loop_exit
      _
    %1417 = vsyncpa [#allocation3], 1
    %s1418 = scalar_lea.sflag [#allocation3], 1
    %1419 = vsyncpa %s1418, 1
    %1420 = vsyncpa [#allocation6], 1
    %s1421 = scalar_lea.sflag [#allocation6], 1
    %1422 = vsyncpa %s1421, 1
    %1423 = vsyncpa [#allocation9], 1
    %1424 = vsyncpa [#allocation12], 1
    %1425 = vsyncpa [#allocation4], 1
    %s1426 = scalar_lea.sflag [#allocation4], 1
    %1427 = vsyncpa %s1426, 1

</llo_original>
